<compile_context>
chip_gen: v7x
topology: tpu7x:2x2x1
jax: 0.10.0
libtpu: 0.0.40
codegen_flags: <defaults>
</compile_context>

<pallas_src>
import functools

import jax
import jax.numpy as jnp
from jax.experimental import pallas as pl
from jax.experimental.pallas import tpu as pltpu

BN_EPS = 1e-5
LANE = 128
BATCH_ALIGN = 16          # bf16 sublane packing: batch tiles are multiples of 16


def _round_up(x, m):
    return (x + m - 1) // m * m


def _silu(x):
    return x * jax.nn.sigmoid(x)


# ---------------------------------------------------------------------------
# Hardware gating / capability probes
# ---------------------------------------------------------------------------
@functools.cache
def _hw_config():
    """Generation-gated tiling knobs derived from VMEM capacity."""
    vmem_cap = 64 * 1024 * 1024
    try:
        info = pltpu.get_tpu_info()
        vmem_cap = int(getattr(info, "vmem_capacity_bytes", vmem_cap))
    except Exception:
        pass
    if vmem_cap >= 96 * 1024 * 1024:
        # v5e / v6e: 128 MiB VMEM, single TensorCore -> big tiles, high limit.
        return {"vmem_limit": 100 * 1024 * 1024, "max_tile_n": 512,
                "max_weight_bytes": 32 * 1024 * 1024, "two_core": False}
    # v7x: 64 MiB VMEM per TensorCore, 2 TensorCores (megacore).
    return {"vmem_limit": 48 * 1024 * 1024, "max_tile_n": 256,
            "max_weight_bytes": 16 * 1024 * 1024, "two_core": True}


@functools.cache
def _buffered_single_supported():
    """Probe (once, outside jit) whether pipeline_mode=pl.Buffered(1) lowers."""
    def _copy(x_ref, o_ref):
        o_ref[...] = x_ref[...]
    try:
        fn = pl.pallas_call(
            _copy,
            out_shape=jax.ShapeDtypeStruct((8, LANE), jnp.float32),
            grid=(2,),
            in_specs=[pl.BlockSpec((8, LANE), lambda i: (0, 0),
                                   pipeline_mode=pl.Buffered(1))],
            out_specs=pl.BlockSpec((8, LANE), lambda i: (0, 0)),
        )
        jax.block_until_ready(fn(jnp.zeros((8, LANE), jnp.float32)))
        return True
    except Exception:
        return False


def _choose_tile_f(f_in, f_out, max_weight_bytes):
    """Output-feature tile so one (f_in, tile_f) bf16 weight block fits the budget."""
    if f_in * f_out * 2 <= max_weight_bytes:
        return f_out
    tile_f = (max_weight_bytes // (2 * f_in)) // LANE * LANE
    tile_f = max(LANE, min(tile_f, f_out))
    while f_out % tile_f:
        tile_f -= LANE
    return tile_f


# ---------------------------------------------------------------------------
# Fused layer kernel: [BN apply] -> Linear -> [SiLU] (+ fused batch stats)
# ---------------------------------------------------------------------------
def _make_layer_kernel(*, apply_bn, apply_silu, emit_stats, batch_axis,
                       n_actual, tile_n, need_mask):
    """When emit_stats, per-feature sum / sum-sq of the stored (bf16) output are
    accumulated into the resident (1, tile_f) stat output blocks across batch
    tiles and finalized in place (mean, rsqrt(var+eps)) on the last batch tile.
    Padded batch rows are masked out on the final tile only."""
    inv_n = 1.0 / float(n_actual)

    def kernel(*refs):
        if apply_bn:
            h_ref, mean_ref, rstd_ref, g_ref, bt_ref, w_ref, b_ref = refs[:7]
            rest = refs[7:]
        else:
            h_ref, w_ref, b_ref = refs[:3]
            rest = refs[3:]
        if emit_stats:
            o_ref, sum_ref, sq_ref = rest
        else:
            (o_ref,) = rest

        x = h_ref[...]
        if apply_bn:
            xf = x.astype(jnp.float32)
            xf = (xf - mean_ref[...]) * (rstd_ref[...] * g_ref[...]) + bt_ref[...]
            # Dropout(p=0.0) is identity.
            x = xf.astype(jnp.bfloat16)

        y = jnp.dot(x, w_ref[...], preferred_element_type=jnp.float32) + b_ref[...]
        if apply_silu:
            y = _silu(y)
        y_out = y.astype(o_ref.dtype)
        o_ref[...] = y_out

        if emit_stats:
            i = pl.program_id(batch_axis)
            nb = pl.num_programs(batch_axis)
            # Stats over the exact (bf16-rounded) values the next layer reads.
            y_stat = y_out.astype(jnp.float32)

            @pl.when(i == 0)
            def _():
                sum_ref[...] = jnp.zeros_like(sum_ref)
                sq_ref[...] = jnp.zeros_like(sq_ref)

            def accum(v):
                sum_ref[...] += jnp.sum(v, axis=0, keepdims=True)
                sq_ref[...] += jnp.sum(v * v, axis=0, keepdims=True)

            if need_mask:
                # Only the final batch tile contains padded rows.
                @pl.when(i != nb - 1)
                def _():
                    accum(y_stat)

                @pl.when(i == nb - 1)
                def _():
                    rows = (jax.lax.broadcasted_iota(jnp.int32, (tile_n, 1), 0)
                            + i * tile_n)
                    accum(jnp.where(rows < n_actual, y_stat, 0.0))
            else:
                accum(y_stat)

            # Finalize in place: sum -> mean, sum_sq -> rsqrt(var + eps).
            # NOTE: single-pass var = E[x^2] - mean^2 in f32 (clamped at 0).
            @pl.when(i == nb - 1)
            def _():
                mean = sum_ref[...] * inv_n
                var = jnp.maximum(sq_ref[...] * inv_n - mean * mean, 0.0)
                sum_ref[...] = mean
                sq_ref[...] = jax.lax.rsqrt(var + BN_EPS)

    return kernel


def _layer_stage(h, w, b, bn, *, apply_silu, emit_stats, out_dtype,
                 n_actual, tile_n, tile_f, vmem_limit):
    """One MLP layer as a single pallas_call."""
    n_pad, f_in = h.shape
    f_out = w.shape[1]
    n_tiles = n_pad // tile_n
    f_tiles = f_out // tile_f
    apply_bn = bn is not None
    need_mask = n_pad != n_actual

    def inv_spec(shape, index_map):
        # Single-buffer operands whose block never changes across the grid.
        if _buffered_single_supported():
            return pl.BlockSpec(shape, index_map, pipeline_mode=pl.Buffered(1))
        return pl.BlockSpec(shape, index_map)

    if emit_stats:
        # Grid (feature tiles, batch tiles): batch innermost / "arbitrary" so
        # the (1, tile_f) stat outputs stay resident VMEM accumulators.
        # TODO(synk): on v7x megacore this serializes the batch axis for the
        # stats-emitting stages; a per-tile partial-sum variant would keep it
        # "parallel".
        grid = (f_tiles, n_tiles)
        dim_sem = ("parallel", "arbitrary")
        h_map = lambda j, i: (i, 0)
        vec_map = lambda j, i: (0, 0)
        wmat_map = lambda j, i: (0, j)
        out_map = lambda j, i: (i, j)
        stat_map = lambda j, i: (0, j)
        batch_axis = 1
    else:
        grid = (n_tiles, f_tiles)
        dim_sem = ("parallel", "parallel")
        h_map = lambda i, j: (i, 0)
        vec_map = lambda i, j: (0, 0)
        wmat_map = lambda i, j: (0, j)
        out_map = lambda i, j: (i, j)
        stat_map = None
        batch_axis = 0

    in_specs = [pl.BlockSpec((tile_n, f_in), h_map)]
    args = [h]
    if apply_bn:
        for v in bn:                                   # mean, rstd, gamma, beta
            in_specs.append(inv_spec((1, f_in), vec_map))
            args.append(v)
    w_ctor = inv_spec if f_tiles == 1 else pl.BlockSpec
    in_specs.append(w_ctor((f_in, tile_f), wmat_map))   # weight (bf16)
    in_specs.append(w_ctor((1, tile_f), wmat_map))      # bias (f32)
    args += [w, b]

    if emit_stats:
        out_shape = (jax.ShapeDtypeStruct((n_pad, f_out), out_dtype),
                     jax.ShapeDtypeStruct((1, f_out), jnp.float32),
                     jax.ShapeDtypeStruct((1, f_out), jnp.float32))
        out_specs = (pl.BlockSpec((tile_n, tile_f), out_map),
                     pl.BlockSpec((1, tile_f), stat_map),
                     pl.BlockSpec((1, tile_f), stat_map))
    else:
        out_shape = jax.ShapeDtypeStruct((n_pad, f_out), out_dtype)
        out_specs = pl.BlockSpec((tile_n, tile_f), out_map)

    in_item = jnp.dtype(h.dtype).itemsize
    out_item = jnp.dtype(out_dtype).itemsize
    cost = pl.CostEstimate(
        flops=2 * n_pad * f_in * f_out
              + (6 * n_pad * f_in if apply_bn else 0)
              + (4 * n_pad * f_out if apply_silu else 0)
              + (3 * n_pad * f_out if emit_stats else 0),
        transcendentals=n_pad * f_out if apply_silu else 0,
        bytes_accessed=n_pad * f_in * in_item * f_tiles
                       + f_in * f_out * 2 + f_out * 4
                       + n_pad * f_out * out_item
                       + (4 * f_in * 4 if apply_bn else 0)
                       + (2 * f_out * 4 if emit_stats else 0),
    )

    kernel = _make_layer_kernel(apply_bn=apply_bn, apply_silu=apply_silu,
                                emit_stats=emit_stats, batch_axis=batch_axis,
                                n_actual=n_actual, tile_n=tile_n,
                                need_mask=need_mask)
    return pl.pallas_call(
        kernel,
        out_shape=out_shape,
        grid=grid,
        in_specs=in_specs,
        out_specs=out_specs,
        compiler_params=pltpu.CompilerParams(
            dimension_semantics=dim_sem, vmem_limit_bytes=vmem_limit),
        cost_estimate=cost,
    )(*args)


# ---------------------------------------------------------------------------
# Parameters / padding (done once, outside the jitted forward)
# ---------------------------------------------------------------------------
def init_mlp_params(key, emb_dim, width, num_layers):
    """PyTorch-style uniform(+-1/sqrt(fan_in)) init; weights stored [in, out], f32."""
    def linear(k, fan_in, fan_out):
        kw, kb = jax.random.split(k)
        bound = 1.0 / float(fan_in) ** 0.5
        return (jax.random.uniform(kw, (fan_in, fan_out), jnp.float32, -bound, bound),
                jax.random.uniform(kb, (fan_out,), jnp.float32, -bound, bound))

    params = []
    keys = jax.random.split(key, num_layers + 2)
    params += list(linear(keys[0], emb_dim, width))            # input projection
    for i in range(num_layers):
        params.append(jnp.ones((width,), jnp.float32))         # BN gamma
        params.append(jnp.zeros((width,), jnp.float32))        # BN beta
        params += list(linear(keys[1 + i], width, width))      # hidden linear
    params += list(linear(keys[-1], width, emb_dim))           # output projection
    return params


def _pad2(a, rows, cols):
    return jnp.pad(a, ((0, rows - a.shape[0]), (0, cols - a.shape[1])))


def _pad_row(a, cols):
    a = a.reshape(1, -1)
    return jnp.pad(a, ((0, 0), (0, cols - a.shape[1])))


def pad_mlp_params(params, emb_dim, width, num_layers):
    """Pad params to lane multiples ONCE outside the jitted forward.

    Weights -> bf16 [in_pad, out_pad]; biases / BN affine -> f32 (1, out_pad).
    Zero-padding is load-bearing: padded feature columns produce SiLU(0)=0
    activations and, with gamma/beta zero-padded, BatchNorm keeps them at 0,
    so padding never leaks into real outputs.
    """
    emb_pad = _round_up(emb_dim, LANE)
    width_pad = _round_up(width, LANE)
    out, idx = [], 0
    w, b = params[idx], params[idx + 1]; idx += 2
    out += [_pad2(w.astype(jnp.bfloat16), emb_pad, width_pad), _pad_row(b, width_pad)]
    for _ in range(num_layers):
        g, bt, w, b = params[idx:idx + 4]; idx += 4
        out += [_pad_row(g, width_pad), _pad_row(bt, width_pad),
                _pad2(w.astype(jnp.bfloat16), width_pad, width_pad),
                _pad_row(b, width_pad)]
    w, b = params[idx], params[idx + 1]
    out += [_pad2(w.astype(jnp.bfloat16), width_pad, emb_pad), _pad_row(b, emb_pad)]
    return out


# ---------------------------------------------------------------------------
# Forward / reference
# ---------------------------------------------------------------------------
def mlp_forward(x, pparams, num_layers, *, max_weight_bytes=None, max_tile_n=None):
    """Forward pass over pre-padded params (see pad_mlp_params)."""
    n, emb_dim = x.shape
    emb_pad, width_pad = pparams[0].shape
    cfg = _hw_config()
    vmem_limit = cfg["vmem_limit"]
    max_tile = max_tile_n or cfg["max_tile_n"]
    max_w_bytes = max_weight_bytes or cfg["max_weight_bytes"]

    # Batch tiling: multiples of 16 (bf16 sublane packing).  Split into >=2
    # tiles when the batch allows it (always on v7x so both TensorCores get
    # work on the "parallel" axis; on 1-TC chips only when it adds no padding).
    n_align = _round_up(n, BATCH_ALIGN)
    half = _round_up(max(n_align // 2, BATCH_ALIGN), BATCH_ALIGN)
    if n_align >= 2 * BATCH_ALIGN and (cfg["two_core"] or 2 * half == n_align):
        tile_n = min(max_tile, half)
    else:
        tile_n = min(max_tile, n_align)
    n_pad = _round_up(n, tile_n)

    h = jnp.pad(x.astype(jnp.float32),
                ((0, n_pad - n), (0, emb_pad - emb_dim))).astype(jnp.bfloat16)

    stage = functools.partial(_layer_stage, n_actual=n, tile_n=tile_n,
                              vmem_limit=vmem_limit)

    idx = 0
    w, b = pparams[idx], pparams[idx + 1]; idx += 2
    tile_f0 = _choose_tile_f(emb_pad, width_pad, max_w_bytes)
    if num_layers > 0:
        h, s_mean, s_rstd = stage(h, w, b, None, apply_silu=True, emit_stats=True,
                                  out_dtype=jnp.bfloat16, tile_f=tile_f0)
        stats = (s_mean, s_rstd)
    else:
        h = stage(h, w, b, None, apply_silu=True, emit_stats=False,
                  out_dtype=jnp.bfloat16, tile_f=tile_f0)
        stats = None

    for layer in range(num_layers):
        g, bt, w, b = pparams[idx:idx + 4]; idx += 4
        emit = layer < num_layers - 1
        res = stage(h, w, b, (stats[0], stats[1], g, bt),
                    apply_silu=True, emit_stats=emit, out_dtype=jnp.bfloat16,
                    tile_f=_choose_tile_f(width_pad, width_pad, max_w_bytes))
        if emit:
            h, s_mean, s_rstd = res
            stats = (s_mean, s_rstd)
        else:
            h = res

    w, b = pparams[idx], pparams[idx + 1]
    out = stage(h, w, b, None, apply_silu=False, emit_stats=False,
                out_dtype=jnp.float32,
                tile_f=_choose_tile_f(width_pad, emb_pad, max_w_bytes))
    return out[:n, :emb_dim].astype(x.dtype)


def mlp_reference(x, params, num_layers):
    """Pure-JAX reference with the kernel's numerics: bf16 matmul operands and
    bf16 inter-layer activations, f32 accumulation, training-mode batch stats."""
    def mm(h_bf16, w):
        return jnp.dot(h_bf16.astype(jnp.float32),
                       w.astype(jnp.bfloat16).astype(jnp.float32))

    idx = 0
    w, b = params[idx], params[idx + 1]; idx += 2
    h = _silu(mm(x.astype(jnp.bfloat16), w) + b).astype(jnp.bfloat16)
    for _ in range(num_layers):
        g, bt, w, b = params[idx:idx + 4]; idx += 4
        hf = h.astype(jnp.float32)
        mean = jnp.mean(hf, axis=0, keepdims=True)
        var = jnp.maximum(jnp.mean(hf * hf, axis=0, keepdims=True) - mean * mean, 0.0)
        hn = (hf - mean) * (jax.lax.rsqrt(var + BN_EPS) * g) + bt
        h = _silu(mm(hn.astype(jnp.bfloat16), w) + b).astype(jnp.bfloat16)
    w, b = params[idx], params[idx + 1]
    return mm(h, w) + b


if __name__ == "__main__":
    _buffered_single_supported()   # probe once outside jit; result is cached

    key = jax.random.PRNGKey(0)
    k1, k2, k3, k4 = jax.random.split(key, 4)

    # --- test 1: module-sized config (batch=8, emb_dim=16, width=32, 2 layers) ---
    emb_dim, width, num_layers, batch = 16, 32, 2, 8
    x = jax.random.normal(k1, (batch, emb_dim), jnp.float32)
    params = init_mlp_params(k2, emb_dim, width, num_layers)
    pparams = pad_mlp_params(params, emb_dim, width, num_layers)
    fwd = jax.jit(functools.partial(mlp_forward, num_layers=num_layers))
    out = jax.block_until_ready(fwd(x, pparams))
    ref = mlp_reference(x, params, num_layers)
    assert out.shape == (batch, emb_dim)
    err = float(jnp.max(jnp.abs(out - ref)))
    assert jnp.allclose(out, ref, atol=1e-2, rtol=1e-2), f"test1 mismatch ({err})"

    # --- test 2: exercises multi-batch-tile fused stats accumulation, the
    # masked final tile, and output-feature tiling (forced via small budgets).
    emb2, width2, layers2, batch2 = 48, 256, 2, 40
    x2 = jax.random.normal(k3, (batch2, emb2), jnp.float32)
    params2 = init_mlp_params(k4, emb2, width2, layers2)
    pparams2 = pad_mlp_params(params2, emb2, width2, layers2)
    fwd2 = jax.jit(functools.partial(mlp_forward, num_layers=layers2,
                                     max_weight_bytes=32 * 1024, max_tile_n=32))
    out2 = jax.block_until_ready(fwd2(x2, pparams2))
    ref2 = mlp_reference(x2, params2, layers2)
    err2 = float(jnp.max(jnp.abs(out2 - ref2)))
    assert jnp.allclose(out2, ref2, atol=2e-2, rtol=2e-2), f"test2 mismatch ({err2})"

    print("KERNEL_OK")
</pallas_src>

<mosaic_0001>
module attributes {stable_mosaic.version = 11 : i64} {
  func.func @_copy(%arg0: i32, %arg1: memref<8x128xf32, #tpu.memory_space<vmem>>, %arg2: memref<8x128xf32, #tpu.memory_space<vmem>>) attributes {dimension_semantics = [#tpu.dimension_semantics<arbitrary>], iteration_bounds = array<i64: 2>, scalar_prefetch = 0 : i64, scratch_operands = 0 : i64, tpu.core_type = #tpu.core_type<tc>, window_params = [{pipeline_mode = #tpu.pipeline_mode<synchronous>, transform_indices = @transform_0, window_bounds = array<i64: 8, 128>}, {pipeline_mode = #tpu.pipeline_mode<synchronous>, transform_indices = @transform_1, window_bounds = array<i64: 8, 128>}]} {
    %c0 = arith.constant 0 : index
    %c0_0 = arith.constant 0 : index
    %0 = vector.load %arg1[%c0, %c0_0] : memref<8x128xf32, #tpu.memory_space<vmem>>, vector<8x128xf32>
    %c0_1 = arith.constant 0 : index
    %c0_2 = arith.constant 0 : index
    %1 = vector.load %arg2[%c0_1, %c0_2] : memref<8x128xf32, #tpu.memory_space<vmem>>, vector<8x128xf32>
    tpu.vector_store %arg2[%c0_1, %c0_2], %0 {strides = array<i32>} : memref<8x128xf32, #tpu.memory_space<vmem>>, vector<8x128xf32>,
    return
  }
  func.func @transform_0(%arg0: i32) -> (i32, i32) {
    %c0_i32 = arith.constant 0 : i32
    %c0_i32_0 = arith.constant 0 : i32
    %c0_i32_1 = arith.constant 0 : i32
    return %c0_i32, %c0_i32_0 : i32, i32
  }
  func.func @transform_1(%arg0: i32) -> (i32, i32) {
    %c0_i32 = arith.constant 0 : i32
    %c0_i32_0 = arith.constant 0 : i32
    %c0_i32_1 = arith.constant 0 : i32
    return %c0_i32, %c0_i32_0 : i32, i32
  }
}

module attributes {stable_mosaic.version = 11 : i64} {
  func.func @kernel(%arg0: i32, %arg1: i32, %arg2: memref<16x128xbf16, #tpu.memory_space<vmem>>, %arg3: memref<1x128xf32, #tpu.memory_space<vmem>>, %arg4: memref<1x128xf32, #tpu.memory_space<vmem>>, %arg5: memref<1x128xf32, #tpu.memory_space<vmem>>, %arg6: memref<1x128xf32, #tpu.memory_space<vmem>>, %arg7: memref<128x128xbf16, #tpu.memory_space<vmem>>, %arg8: memref<1x128xf32, #tpu.memory_space<vmem>>, %arg9: memref<16x128xbf16, #tpu.memory_space<vmem>>, %arg10: memref<1x128xf32, #tpu.memory_space<vmem>>, %arg11: memref<1x128xf32, #tpu.memory_space<vmem>>) attributes {dimension_semantics = [#tpu.dimension_semantics<parallel>, #tpu.dimension_semantics<arbitrary>], iteration_bounds = array<i64: 1, 1>, scalar_prefetch = 0 : i64, scratch_operands = 0 : i64, tpu.core_type = #tpu.core_type<tc>, window_params = [{transform_indices = @transform_0, window_bounds = array<i64: 16, 128>}, {pipeline_mode = #tpu.pipeline_mode<synchronous>, transform_indices = @transform_1, window_bounds = array<i64: 1, 128>}, {pipeline_mode = #tpu.pipeline_mode<synchronous>, transform_indices = @transform_2, window_bounds = array<i64: 1, 128>}, {pipeline_mode = #tpu.pipeline_mode<synchronous>, transform_indices = @transform_3, window_bounds = array<i64: 1, 128>}, {pipeline_mode = #tpu.pipeline_mode<synchronous>, transform_indices = @transform_4, window_bounds = array<i64: 1, 128>}, {transform_indices = @transform_5, window_bounds = array<i64: 128, 128>}, {transform_indices = @transform_6, window_bounds = array<i64: 1, 128>}, {transform_indices = @transform_7, window_bounds = array<i64: 16, 128>}, {transform_indices = @transform_8, window_bounds = array<i64: 1, 128>}, {transform_indices = @transform_9, window_bounds = array<i64: 1, 128>}]} {
    %c0 = arith.constant 0 : index
    %c0_0 = arith.constant 0 : index
    %0 = vector.load %arg2[%c0, %c0_0] : memref<16x128xbf16, #tpu.memory_space<vmem>>, vector<16x128xbf16>
    %1 = arith.extf %0 : vector<16x128xbf16> to vector<16x128xf32>
    %c0_1 = arith.constant 0 : index
    %c0_2 = arith.constant 0 : index
    %2 = vector.load %arg3[%c0_1, %c0_2] : memref<1x128xf32, #tpu.memory_space<vmem>>, vector<1x128xf32>
    %3 = vector.broadcast %2 : vector<1x128xf32> to vector<16x128xf32>
    %4 = arith.subf %1, %3 : vector<16x128xf32>
    %c0_3 = arith.constant 0 : index
    %c0_4 = arith.constant 0 : index
    %5 = vector.load %arg4[%c0_3, %c0_4] : memref<1x128xf32, #tpu.memory_space<vmem>>, vector<1x128xf32>
    %c0_5 = arith.constant 0 : index
    %c0_6 = arith.constant 0 : index
    %6 = vector.load %arg5[%c0_5, %c0_6] : memref<1x128xf32, #tpu.memory_space<vmem>>, vector<1x128xf32>
    %7 = arith.mulf %5, %6 : vector<1x128xf32>
    %8 = vector.broadcast %7 : vector<1x128xf32> to vector<16x128xf32>
    %9 = arith.mulf %4, %8 : vector<16x128xf32>
    %c0_7 = arith.constant 0 : index
    %c0_8 = arith.constant 0 : index
    %10 = vector.load %arg6[%c0_7, %c0_8] : memref<1x128xf32, #tpu.memory_space<vmem>>, vector<1x128xf32>
    %11 = vector.broadcast %10 : vector<1x128xf32> to vector<16x128xf32>
    %12 = arith.addf %9, %11 : vector<16x128xf32>
    %13 = arith.truncf %12 : vector<16x128xf32> to vector<16x128xbf16>
    %c0_9 = arith.constant 0 : index
    %c0_10 = arith.constant 0 : index
    %14 = vector.load %arg7[%c0_9, %c0_10] : memref<128x128xbf16, #tpu.memory_space<vmem>>, vector<128x128xbf16>
    %cst = arith.constant dense<0.000000e+00> : vector<16x128xf32>
    %15 = tpu.matmul %13, %14, %cst {dimension_numbers = #tpu.dot_dimension_numbers<[1], [0], [0], [1], [0, 0, 1, 1], [], []>} : vector<16x128xbf16>, vector<128x128xbf16>, vector<16x128xf32> -> vector<16x128xf32>
    %c0_11 = arith.constant 0 : index
    %c0_12 = arith.constant 0 : index
    %16 = vector.load %arg8[%c0_11, %c0_12] : memref<1x128xf32, #tpu.memory_space<vmem>>, vector<1x128xf32>
    %17 = vector.broadcast %16 : vector<1x128xf32> to vector<16x128xf32>
    %18 = arith.addf %15, %17 : vector<16x128xf32>
    %19 = arith.negf %18 : vector<16x128xf32>
    %20 = math.exp %19 : vector<16x128xf32>
    %cst_13 = arith.constant 1.000000e+00 : f32
    %21 = vector.broadcast %cst_13 : f32 to vector<16x128xf32>
    %22 = arith.addf %21, %20 : vector<16x128xf32>
    %23 = arith.divf %21, %22 : vector<16x128xf32>
    %24 = arith.mulf %18, %23 : vector<16x128xf32>
    %25 = arith.truncf %24 : vector<16x128xf32> to vector<16x128xbf16>
    %c0_14 = arith.constant 0 : index
    %c0_15 = arith.constant 0 : index
    %26 = vector.load %arg9[%c0_14, %c0_15] : memref<16x128xbf16, #tpu.memory_space<vmem>>, vector<16x128xbf16>
    tpu.vector_store %arg9[%c0_14, %c0_15], %25 {strides = array<i32>} : memref<16x128xbf16, #tpu.memory_space<vmem>>, vector<16x128xbf16>,
    %27 = arith.extf %25 : vector<16x128xbf16> to vector<16x128xf32>
    %c0_i32 = arith.constant 0 : i32
    %28 = arith.cmpi eq, %arg1, %c0_i32 : i32
    %29 = arith.extui %28 : i1 to i32
    %c0_i32_16 = arith.constant 0 : i32
    %30 = arith.cmpi ne, %29, %c0_i32_16 : i32
    scf.if %30 {
      %cst_23 = arith.constant 0.000000e+00 : f32
      %40 = vector.broadcast %cst_23 : f32 to vector<1x128xf32>
      %c0_24 = arith.constant 0 : index
      %c0_25 = arith.constant 0 : index
      %41 = vector.load %arg10[%c0_24, %c0_25] : memref<1x128xf32, #tpu.memory_space<vmem>>, vector<1x128xf32>
      tpu.vector_store %arg10[%c0_24, %c0_25], %40 {strides = array<i32>} : memref<1x128xf32, #tpu.memory_space<vmem>>, vector<1x128xf32>,
      %cst_26 = arith.constant 0.000000e+00 : f32
      %42 = vector.broadcast %cst_26 : f32 to vector<1x128xf32>
      %c0_27 = arith.constant 0 : index
      %c0_28 = arith.constant 0 : index
      %43 = vector.load %arg11[%c0_27, %c0_28] : memref<1x128xf32, #tpu.memory_space<vmem>>, vector<1x128xf32>
      tpu.vector_store %arg11[%c0_27, %c0_28], %42 {strides = array<i32>} : memref<1x128xf32, #tpu.memory_space<vmem>>, vector<1x128xf32>,
    } else {
    }
    %c0_i32_17 = arith.constant 0 : i32
    %31 = arith.cmpi ne, %arg1, %c0_i32_17 : i32
    %32 = arith.extui %31 : i1 to i32
    %c0_i32_18 = arith.constant 0 : i32
    %33 = arith.cmpi ne, %32, %c0_i32_18 : i32
    scf.if %33 {
      %c0_23 = arith.constant 0 : index
      %c0_24 = arith.constant 0 : index
      %40 = vector.load %arg10[%c0_23, %c0_24] : memref<1x128xf32, #tpu.memory_space<vmem>>, vector<1x128xf32>
      %cst_25 = arith.constant dense<0.000000e+00> : vector<128xf32>
      %41 = vector.multi_reduction <add>, %27, %cst_25 [0] : vector<16x128xf32> to vector<128xf32>
      %42 = vector.shape_cast %41 : vector<128xf32> to vector<1x128xf32>
      %43 = arith.addf %40, %42 : vector<1x128xf32>
      %c0_26 = arith.constant 0 : index
      %c0_27 = arith.constant 0 : index
      %44 = vector.load %arg10[%c0_26, %c0_27] : memref<1x128xf32, #tpu.memory_space<vmem>>, vector<1x128xf32>
      tpu.vector_store %arg10[%c0_26, %c0_27], %43 {strides = array<i32>} : memref<1x128xf32, #tpu.memory_space<vmem>>, vector<1x128xf32>,
      %c0_28 = arith.constant 0 : index
      %c0_29 = arith.constant 0 : index
      %45 = vector.load %arg11[%c0_28, %c0_29] : memref<1x128xf32, #tpu.memory_space<vmem>>, vector<1x128xf32>
      %46 = arith.mulf %27, %27 : vector<16x128xf32>
      %cst_30 = arith.constant dense<0.000000e+00> : vector<128xf32>
      %47 = vector.multi_reduction <add>, %46, %cst_30 [0] : vector<16x128xf32> to vector<128xf32>
      %48 = vector.shape_cast %47 : vector<128xf32> to vector<1x128xf32>
      %49 = arith.addf %45, %48 : vector<1x128xf32>
      %c0_31 = arith.constant 0 : index
      %c0_32 = arith.constant 0 : index
      %50 = vector.load %arg11[%c0_31, %c0_32] : memref<1x128xf32, #tpu.memory_space<vmem>>, vector<1x128xf32>
      tpu.vector_store %arg11[%c0_31, %c0_32], %49 {strides = array<i32>} : memref<1x128xf32, #tpu.memory_space<vmem>>, vector<1x128xf32>,
    } else {
    }
    %c0_i32_19 = arith.constant 0 : i32
    %34 = arith.cmpi eq, %arg1, %c0_i32_19 : i32
    %35 = arith.extui %34 : i1 to i32
    %c0_i32_20 = arith.constant 0 : i32
    %36 = arith.cmpi ne, %35, %c0_i32_20 : i32
    scf.if %36 {
      %40 = tpu.iota {dimensions = array<i32: 0>} : vector<16x1xi32>
      %c16_i32 = arith.constant 16 : i32
      %41 = arith.muli %arg1, %c16_i32 : i32
      %42 = vector.broadcast %41 : i32 to vector<16x1xi32>
      %43 = arith.addi %40, %42 : vector<16x1xi32>
      %c8_i32 = arith.constant 8 : i32
      %44 = vector.broadcast %c8_i32 : i32 to vector<16x1xi32>
      %45 = arith.cmpi slt, %43, %44 : vector<16x1xi32>
      %cst_23 = arith.constant 0.000000e+00 : f32
      %46 = vector.shape_cast %45 : vector<16x1xi1> to vector<16x1xi1>
      %47 = vector.broadcast %46 : vector<16x1xi1> to vector<16x128xi1>
      %48 = vector.broadcast %cst_23 : f32 to vector<16x128xf32>
      %49 = arith.select %47, %27, %48 : vector<16x128xi1>, vector<16x128xf32>
      %c0_24 = arith.constant 0 : index
      %c0_25 = arith.constant 0 : index
      %50 = vector.load %arg10[%c0_24, %c0_25] : memref<1x128xf32, #tpu.memory_space<vmem>>, vector<1x128xf32>
      %cst_26 = arith.constant dense<0.000000e+00> : vector<128xf32>
      %51 = vector.multi_reduction <add>, %49, %cst_26 [0] : vector<16x128xf32> to vector<128xf32>
      %52 = vector.shape_cast %51 : vector<128xf32> to vector<1x128xf32>
      %53 = arith.addf %50, %52 : vector<1x128xf32>
      %c0_27 = arith.constant 0 : index
      %c0_28 = arith.constant 0 : index
      %54 = vector.load %arg10[%c0_27, %c0_28] : memref<1x128xf32, #tpu.memory_space<vmem>>, vector<1x128xf32>
      tpu.vector_store %arg10[%c0_27, %c0_28], %53 {strides = array<i32>} : memref<1x128xf32, #tpu.memory_space<vmem>>, vector<1x128xf32>,
      %c0_29 = arith.constant 0 : index
      %c0_30 = arith.constant 0 : index
      %55 = vector.load %arg11[%c0_29, %c0_30] : memref<1x128xf32, #tpu.memory_space<vmem>>, vector<1x128xf32>
      %56 = arith.mulf %49, %49 : vector<16x128xf32>
      %cst_31 = arith.constant dense<0.000000e+00> : vector<128xf32>
      %57 = vector.multi_reduction <add>, %56, %cst_31 [0] : vector<16x128xf32> to vector<128xf32>
      %58 = vector.shape_cast %57 : vector<128xf32> to vector<1x128xf32>
      %59 = arith.addf %55, %58 : vector<1x128xf32>
      %c0_32 = arith.constant 0 : index
      %c0_33 = arith.constant 0 : index
      %60 = vector.load %arg11[%c0_32, %c0_33] : memref<1x128xf32, #tpu.memory_space<vmem>>, vector<1x128xf32>
      tpu.vector_store %arg11[%c0_32, %c0_33], %59 {strides = array<i32>} : memref<1x128xf32, #tpu.memory_space<vmem>>, vector<1x128xf32>,
    } else {
    }
    %c0_i32_21 = arith.constant 0 : i32
    %37 = arith.cmpi eq, %arg1, %c0_i32_21 : i32
    %38 = arith.extui %37 : i1 to i32
    %c0_i32_22 = arith.constant 0 : i32
    %39 = arith.cmpi ne, %38, %c0_i32_22 : i32
    scf.if %39 {
      %c0_23 = arith.constant 0 : index
      %c0_24 = arith.constant 0 : index
      %40 = vector.load %arg10[%c0_23, %c0_24] : memref<1x128xf32, #tpu.memory_space<vmem>>, vector<1x128xf32>
      %cst_25 = arith.constant 1.250000e-01 : f32
      %41 = vector.broadcast %cst_25 : f32 to vector<1x128xf32>
      %42 = arith.mulf %40, %41 : vector<1x128xf32>
      %c0_26 = arith.constant 0 : index
      %c0_27 = arith.constant 0 : index
      %43 = vector.load %arg11[%c0_26, %c0_27] : memref<1x128xf32, #tpu.memory_space<vmem>>, vector<1x128xf32>
      %cst_28 = arith.constant 1.250000e-01 : f32
      %44 = vector.broadcast %cst_28 : f32 to vector<1x128xf32>
      %45 = arith.mulf %43, %44 : vector<1x128xf32>
      %46 = arith.mulf %42, %42 : vector<1x128xf32>
      %47 = arith.subf %45, %46 : vector<1x128xf32>
      %cst_29 = arith.constant 0.000000e+00 : f32
      %48 = vector.broadcast %cst_29 : f32 to vector<1x128xf32>
      %49 = arith.maximumf %47, %48 : vector<1x128xf32>
      %c0_30 = arith.constant 0 : index
      %c0_31 = arith.constant 0 : index
      %50 = vector.load %arg10[%c0_30, %c0_31] : memref<1x128xf32, #tpu.memory_space<vmem>>, vector<1x128xf32>
      tpu.vector_store %arg10[%c0_30, %c0_31], %42 {strides = array<i32>} : memref<1x128xf32, #tpu.memory_space<vmem>>, vector<1x128xf32>,
      %cst_32 = arith.constant 9.99999974E-6 : f32
      %51 = vector.broadcast %cst_32 : f32 to vector<1x128xf32>
      %52 = arith.addf %49, %51 : vector<1x128xf32>
      %53 = math.rsqrt %52 : vector<1x128xf32>
      %c0_33 = arith.constant 0 : index
      %c0_34 = arith.constant 0 : index
      %54 = vector.load %arg11[%c0_33, %c0_34] : memref<1x128xf32, #tpu.memory_space<vmem>>, vector<1x128xf32>
      tpu.vector_store %arg11[%c0_33, %c0_34], %53 {strides = array<i32>} : memref<1x128xf32, #tpu.memory_space<vmem>>, vector<1x128xf32>,
    } else {
    }
    return
  }
  func.func @transform_0(%arg0: i32, %arg1: i32) -> (i32, i32) {
    %c0_i32 = arith.constant 0 : i32
    %c0_i32_0 = arith.constant 0 : i32
    return %arg1, %c0_i32 : i32, i32
  }
  func.func @transform_1(%arg0: i32, %arg1: i32) -> (i32, i32) {
    %c0_i32 = arith.constant 0 : i32
    %c0_i32_0 = arith.constant 0 : i32
    %c0_i32_1 = arith.constant 0 : i32
    return %c0_i32, %c0_i32_0 : i32, i32
  }
  func.func @transform_2(%arg0: i32, %arg1: i32) -> (i32, i32) {
    %c0_i32 = arith.constant 0 : i32
    %c0_i32_0 = arith.constant 0 : i32
    %c0_i32_1 = arith.constant 0 : i32
    return %c0_i32, %c0_i32_0 : i32, i32
  }
  func.func @transform_3(%arg0: i32, %arg1: i32) -> (i32, i32) {
    %c0_i32 = arith.constant 0 : i32
    %c0_i32_0 = arith.constant 0 : i32
    %c0_i32_1 = arith.constant 0 : i32
    return %c0_i32, %c0_i32_0 : i32, i32
  }
  func.func @transform_4(%arg0: i32, %arg1: i32) -> (i32, i32) {
    %c0_i32 = arith.constant 0 : i32
    %c0_i32_0 = arith.constant 0 : i32
    %c0_i32_1 = arith.constant 0 : i32
    return %c0_i32, %c0_i32_0 : i32, i32
  }
  func.func @transform_5(%arg0: i32, %arg1: i32) -> (i32, i32) {
    %c0_i32 = arith.constant 0 : i32
    %c0_i32_0 = arith.constant 0 : i32
    return %c0_i32, %arg0 : i32, i32
  }
  func.func @transform_6(%arg0: i32, %arg1: i32) -> (i32, i32) {
    %c0_i32 = arith.constant 0 : i32
    %c0_i32_0 = arith.constant 0 : i32
    return %c0_i32, %arg0 : i32, i32
  }
  func.func @transform_7(%arg0: i32, %arg1: i32) -> (i32, i32) {
    %c0_i32 = arith.constant 0 : i32
    return %arg1, %arg0 : i32, i32
  }
  func.func @transform_8(%arg0: i32, %arg1: i32) -> (i32, i32) {
    %c0_i32 = arith.constant 0 : i32
    %c0_i32_0 = arith.constant 0 : i32
    return %c0_i32, %arg0 : i32, i32
  }
  func.func @transform_9(%arg0: i32, %arg1: i32) -> (i32, i32) {
    %c0_i32 = arith.constant 0 : i32
    %c0_i32_0 = arith.constant 0 : i32
    return %c0_i32, %arg0 : i32, i32
  }
}

module attributes {stable_mosaic.version = 11 : i64} {
  func.func @kernel(%arg0: i32, %arg1: i32, %arg2: memref<16x128xbf16, #tpu.memory_space<vmem>>, %arg3: memref<128x128xbf16, #tpu.memory_space<vmem>>, %arg4: memref<1x128xf32, #tpu.memory_space<vmem>>, %arg5: memref<16x128xbf16, #tpu.memory_space<vmem>>, %arg6: memref<1x128xf32, #tpu.memory_space<vmem>>, %arg7: memref<1x128xf32, #tpu.memory_space<vmem>>) attributes {dimension_semantics = [#tpu.dimension_semantics<parallel>, #tpu.dimension_semantics<arbitrary>], iteration_bounds = array<i64: 1, 1>, scalar_prefetch = 0 : i64, scratch_operands = 0 : i64, tpu.core_type = #tpu.core_type<tc>, window_params = [{transform_indices = @transform_0, window_bounds = array<i64: 16, 128>}, {transform_indices = @transform_1, window_bounds = array<i64: 128, 128>}, {transform_indices = @transform_2, window_bounds = array<i64: 1, 128>}, {transform_indices = @transform_3, window_bounds = array<i64: 16, 128>}, {transform_indices = @transform_4, window_bounds = array<i64: 1, 128>}, {transform_indices = @transform_5, window_bounds = array<i64: 1, 128>}]} {
    %c0 = arith.constant 0 : index
    %c0_0 = arith.constant 0 : index
    %0 = vector.load %arg2[%c0, %c0_0] : memref<16x128xbf16, #tpu.memory_space<vmem>>, vector<16x128xbf16>
    %c0_1 = arith.constant 0 : index
    %c0_2 = arith.constant 0 : index
    %1 = vector.load %arg3[%c0_1, %c0_2] : memref<128x128xbf16, #tpu.memory_space<vmem>>, vector<128x128xbf16>
    %cst = arith.constant dense<0.000000e+00> : vector<16x128xf32>
    %2 = tpu.matmul %0, %1, %cst {dimension_numbers = #tpu.dot_dimension_numbers<[1], [0], [0], [1], [0, 0, 1, 1], [], []>} : vector<16x128xbf16>, vector<128x128xbf16>, vector<16x128xf32> -> vector<16x128xf32>
    %c0_3 = arith.constant 0 : index
    %c0_4 = arith.constant 0 : index
    %3 = vector.load %arg4[%c0_3, %c0_4] : memref<1x128xf32, #tpu.memory_space<vmem>>, vector<1x128xf32>
    %4 = vector.broadcast %3 : vector<1x128xf32> to vector<16x128xf32>
    %5 = arith.addf %2, %4 : vector<16x128xf32>
    %6 = arith.negf %5 : vector<16x128xf32>
    %7 = math.exp %6 : vector<16x128xf32>
    %cst_5 = arith.constant 1.000000e+00 : f32
    %8 = vector.broadcast %cst_5 : f32 to vector<16x128xf32>
    %9 = arith.addf %8, %7 : vector<16x128xf32>
    %10 = arith.divf %8, %9 : vector<16x128xf32>
    %11 = arith.mulf %5, %10 : vector<16x128xf32>
    %12 = arith.truncf %11 : vector<16x128xf32> to vector<16x128xbf16>
    %c0_6 = arith.constant 0 : index
    %c0_7 = arith.constant 0 : index
    %13 = vector.load %arg5[%c0_6, %c0_7] : memref<16x128xbf16, #tpu.memory_space<vmem>>, vector<16x128xbf16>
    tpu.vector_store %arg5[%c0_6, %c0_7], %12 {strides = array<i32>} : memref<16x128xbf16, #tpu.memory_space<vmem>>, vector<16x128xbf16>,
    %14 = arith.extf %12 : vector<16x128xbf16> to vector<16x128xf32>
    %c0_i32 = arith.constant 0 : i32
    %15 = arith.cmpi eq, %arg1, %c0_i32 : i32
    %16 = arith.extui %15 : i1 to i32
    %c0_i32_8 = arith.constant 0 : i32
    %17 = arith.cmpi ne, %16, %c0_i32_8 : i32
    scf.if %17 {
      %cst_15 = arith.constant 0.000000e+00 : f32
      %27 = vector.broadcast %cst_15 : f32 to vector<1x128xf32>
      %c0_16 = arith.constant 0 : index
      %c0_17 = arith.constant 0 : index
      %28 = vector.load %arg6[%c0_16, %c0_17] : memref<1x128xf32, #tpu.memory_space<vmem>>, vector<1x128xf32>
      tpu.vector_store %arg6[%c0_16, %c0_17], %27 {strides = array<i32>} : memref<1x128xf32, #tpu.memory_space<vmem>>, vector<1x128xf32>,
      %cst_18 = arith.constant 0.000000e+00 : f32
      %29 = vector.broadcast %cst_18 : f32 to vector<1x128xf32>
      %c0_19 = arith.constant 0 : index
      %c0_20 = arith.constant 0 : index
      %30 = vector.load %arg7[%c0_19, %c0_20] : memref<1x128xf32, #tpu.memory_space<vmem>>, vector<1x128xf32>
      tpu.vector_store %arg7[%c0_19, %c0_20], %29 {strides = array<i32>} : memref<1x128xf32, #tpu.memory_space<vmem>>, vector<1x128xf32>,
    } else {
    }
    %c0_i32_9 = arith.constant 0 : i32
    %18 = arith.cmpi ne, %arg1, %c0_i32_9 : i32
    %19 = arith.extui %18 : i1 to i32
    %c0_i32_10 = arith.constant 0 : i32
    %20 = arith.cmpi ne, %19, %c0_i32_10 : i32
    scf.if %20 {
      %c0_15 = arith.constant 0 : index
      %c0_16 = arith.constant 0 : index
      %27 = vector.load %arg6[%c0_15, %c0_16] : memref<1x128xf32, #tpu.memory_space<vmem>>, vector<1x128xf32>
      %cst_17 = arith.constant dense<0.000000e+00> : vector<128xf32>
      %28 = vector.multi_reduction <add>, %14, %cst_17 [0] : vector<16x128xf32> to vector<128xf32>
      %29 = vector.shape_cast %28 : vector<128xf32> to vector<1x128xf32>
      %30 = arith.addf %27, %29 : vector<1x128xf32>
      %c0_18 = arith.constant 0 : index
      %c0_19 = arith.constant 0 : index
      %31 = vector.load %arg6[%c0_18, %c0_19] : memref<1x128xf32, #tpu.memory_space<vmem>>, vector<1x128xf32>
      tpu.vector_store %arg6[%c0_18, %c0_19], %30 {strides = array<i32>} : memref<1x128xf32, #tpu.memory_space<vmem>>, vector<1x128xf32>,
      %c0_20 = arith.constant 0 : index
      %c0_21 = arith.constant 0 : index
      %32 = vector.load %arg7[%c0_20, %c0_21] : memref<1x128xf32, #tpu.memory_space<vmem>>, vector<1x128xf32>
      %33 = arith.mulf %14, %14 : vector<16x128xf32>
      %cst_22 = arith.constant dense<0.000000e+00> : vector<128xf32>
      %34 = vector.multi_reduction <add>, %33, %cst_22 [0] : vector<16x128xf32> to vector<128xf32>
      %35 = vector.shape_cast %34 : vector<128xf32> to vector<1x128xf32>
      %36 = arith.addf %32, %35 : vector<1x128xf32>
      %c0_23 = arith.constant 0 : index
      %c0_24 = arith.constant 0 : index
      %37 = vector.load %arg7[%c0_23, %c0_24] : memref<1x128xf32, #tpu.memory_space<vmem>>, vector<1x128xf32>
      tpu.vector_store %arg7[%c0_23, %c0_24], %36 {strides = array<i32>} : memref<1x128xf32, #tpu.memory_space<vmem>>, vector<1x128xf32>,
    } else {
    }
    %c0_i32_11 = arith.constant 0 : i32
    %21 = arith.cmpi eq, %arg1, %c0_i32_11 : i32
    %22 = arith.extui %21 : i1 to i32
    %c0_i32_12 = arith.constant 0 : i32
    %23 = arith.cmpi ne, %22, %c0_i32_12 : i32
    scf.if %23 {
      %27 = tpu.iota {dimensions = array<i32: 0>} : vector<16x1xi32>
      %c16_i32 = arith.constant 16 : i32
      %28 = arith.muli %arg1, %c16_i32 : i32
      %29 = vector.broadcast %28 : i32 to vector<16x1xi32>
      %30 = arith.addi %27, %29 : vector<16x1xi32>
      %c8_i32 = arith.constant 8 : i32
      %31 = vector.broadcast %c8_i32 : i32 to vector<16x1xi32>
      %32 = arith.cmpi slt, %30, %31 : vector<16x1xi32>
      %cst_15 = arith.constant 0.000000e+00 : f32
      %33 = vector.shape_cast %32 : vector<16x1xi1> to vector<16x1xi1>
      %34 = vector.broadcast %33 : vector<16x1xi1> to vector<16x128xi1>
      %35 = vector.broadcast %cst_15 : f32 to vector<16x128xf32>
      %36 = arith.select %34, %14, %35 : vector<16x128xi1>, vector<16x128xf32>
      %c0_16 = arith.constant 0 : index
      %c0_17 = arith.constant 0 : index
      %37 = vector.load %arg6[%c0_16, %c0_17] : memref<1x128xf32, #tpu.memory_space<vmem>>, vector<1x128xf32>
      %cst_18 = arith.constant dense<0.000000e+00> : vector<128xf32>
      %38 = vector.multi_reduction <add>, %36, %cst_18 [0] : vector<16x128xf32> to vector<128xf32>
      %39 = vector.shape_cast %38 : vector<128xf32> to vector<1x128xf32>
      %40 = arith.addf %37, %39 : vector<1x128xf32>
      %c0_19 = arith.constant 0 : index
      %c0_20 = arith.constant 0 : index
      %41 = vector.load %arg6[%c0_19, %c0_20] : memref<1x128xf32, #tpu.memory_space<vmem>>, vector<1x128xf32>
      tpu.vector_store %arg6[%c0_19, %c0_20], %40 {strides = array<i32>} : memref<1x128xf32, #tpu.memory_space<vmem>>, vector<1x128xf32>,
      %c0_21 = arith.constant 0 : index
      %c0_22 = arith.constant 0 : index
      %42 = vector.load %arg7[%c0_21, %c0_22] : memref<1x128xf32, #tpu.memory_space<vmem>>, vector<1x128xf32>
      %43 = arith.mulf %36, %36 : vector<16x128xf32>
      %cst_23 = arith.constant dense<0.000000e+00> : vector<128xf32>
      %44 = vector.multi_reduction <add>, %43, %cst_23 [0] : vector<16x128xf32> to vector<128xf32>
      %45 = vector.shape_cast %44 : vector<128xf32> to vector<1x128xf32>
      %46 = arith.addf %42, %45 : vector<1x128xf32>
      %c0_24 = arith.constant 0 : index
      %c0_25 = arith.constant 0 : index
      %47 = vector.load %arg7[%c0_24, %c0_25] : memref<1x128xf32, #tpu.memory_space<vmem>>, vector<1x128xf32>
      tpu.vector_store %arg7[%c0_24, %c0_25], %46 {strides = array<i32>} : memref<1x128xf32, #tpu.memory_space<vmem>>, vector<1x128xf32>,
    } else {
    }
    %c0_i32_13 = arith.constant 0 : i32
    %24 = arith.cmpi eq, %arg1, %c0_i32_13 : i32
    %25 = arith.extui %24 : i1 to i32
    %c0_i32_14 = arith.constant 0 : i32
    %26 = arith.cmpi ne, %25, %c0_i32_14 : i32
    scf.if %26 {
      %c0_15 = arith.constant 0 : index
      %c0_16 = arith.constant 0 : index
      %27 = vector.load %arg6[%c0_15, %c0_16] : memref<1x128xf32, #tpu.memory_space<vmem>>, vector<1x128xf32>
      %cst_17 = arith.constant 1.250000e-01 : f32
      %28 = vector.broadcast %cst_17 : f32 to vector<1x128xf32>
      %29 = arith.mulf %27, %28 : vector<1x128xf32>
      %c0_18 = arith.constant 0 : index
      %c0_19 = arith.constant 0 : index
      %30 = vector.load %arg7[%c0_18, %c0_19] : memref<1x128xf32, #tpu.memory_space<vmem>>, vector<1x128xf32>
      %cst_20 = arith.constant 1.250000e-01 : f32
      %31 = vector.broadcast %cst_20 : f32 to vector<1x128xf32>
      %32 = arith.mulf %30, %31 : vector<1x128xf32>
      %33 = arith.mulf %29, %29 : vector<1x128xf32>
      %34 = arith.subf %32, %33 : vector<1x128xf32>
      %cst_21 = arith.constant 0.000000e+00 : f32
      %35 = vector.broadcast %cst_21 : f32 to vector<1x128xf32>
      %36 = arith.maximumf %34, %35 : vector<1x128xf32>
      %c0_22 = arith.constant 0 : index
      %c0_23 = arith.constant 0 : index
      %37 = vector.load %arg6[%c0_22, %c0_23] : memref<1x128xf32, #tpu.memory_space<vmem>>, vector<1x128xf32>
      tpu.vector_store %arg6[%c0_22, %c0_23], %29 {strides = array<i32>} : memref<1x128xf32, #tpu.memory_space<vmem>>, vector<1x128xf32>,
      %cst_24 = arith.constant 9.99999974E-6 : f32
      %38 = vector.broadcast %cst_24 : f32 to vector<1x128xf32>
      %39 = arith.addf %36, %38 : vector<1x128xf32>
      %40 = math.rsqrt %39 : vector<1x128xf32>
      %c0_25 = arith.constant 0 : index
      %c0_26 = arith.constant 0 : index
      %41 = vector.load %arg7[%c0_25, %c0_26] : memref<1x128xf32, #tpu.memory_space<vmem>>, vector<1x128xf32>
      tpu.vector_store %arg7[%c0_25, %c0_26], %40 {strides = array<i32>} : memref<1x128xf32, #tpu.memory_space<vmem>>, vector<1x128xf32>,
    } else {
    }
    return
  }
  func.func @transform_0(%arg0: i32, %arg1: i32) -> (i32, i32) {
    %c0_i32 = arith.constant 0 : i32
    %c0_i32_0 = arith.constant 0 : i32
    return %arg1, %c0_i32 : i32, i32
  }
  func.func @transform_1(%arg0: i32, %arg1: i32) -> (i32, i32) {
    %c0_i32 = arith.constant 0 : i32
    %c0_i32_0 = arith.constant 0 : i32
    return %c0_i32, %arg0 : i32, i32
  }
  func.func @transform_2(%arg0: i32, %arg1: i32) -> (i32, i32) {
    %c0_i32 = arith.constant 0 : i32
    %c0_i32_0 = arith.constant 0 : i32
    return %c0_i32, %arg0 : i32, i32
  }
  func.func @transform_3(%arg0: i32, %arg1: i32) -> (i32, i32) {
    %c0_i32 = arith.constant 0 : i32
    return %arg1, %arg0 : i32, i32
  }
  func.func @transform_4(%arg0: i32, %arg1: i32) -> (i32, i32) {
    %c0_i32 = arith.constant 0 : i32
    %c0_i32_0 = arith.constant 0 : i32
    return %c0_i32, %arg0 : i32, i32
  }
  func.func @transform_5(%arg0: i32, %arg1: i32) -> (i32, i32) {
    %c0_i32 = arith.constant 0 : i32
    %c0_i32_0 = arith.constant 0 : i32
    return %c0_i32, %arg0 : i32, i32
  }
}

module attributes {stable_mosaic.version = 11 : i64} {
  func.func @kernel(%arg0: i32, %arg1: i32, %arg2: memref<16x128xbf16, #tpu.memory_space<vmem>>, %arg3: memref<1x128xf32, #tpu.memory_space<vmem>>, %arg4: memref<1x128xf32, #tpu.memory_space<vmem>>, %arg5: memref<1x128xf32, #tpu.memory_space<vmem>>, %arg6: memref<1x128xf32, #tpu.memory_space<vmem>>, %arg7: memref<128x128xbf16, #tpu.memory_space<vmem>>, %arg8: memref<1x128xf32, #tpu.memory_space<vmem>>, %arg9: memref<16x128xbf16, #tpu.memory_space<vmem>>) attributes {dimension_semantics = [#tpu.dimension_semantics<parallel>, #tpu.dimension_semantics<parallel>], iteration_bounds = array<i64: 1, 1>, scalar_prefetch = 0 : i64, scratch_operands = 0 : i64, tpu.core_type = #tpu.core_type<tc>, window_params = [{transform_indices = @transform_0, window_bounds = array<i64: 16, 128>}, {pipeline_mode = #tpu.pipeline_mode<synchronous>, transform_indices = @transform_1, window_bounds = array<i64: 1, 128>}, {pipeline_mode = #tpu.pipeline_mode<synchronous>, transform_indices = @transform_2, window_bounds = array<i64: 1, 128>}, {pipeline_mode = #tpu.pipeline_mode<synchronous>, transform_indices = @transform_3, window_bounds = array<i64: 1, 128>}, {pipeline_mode = #tpu.pipeline_mode<synchronous>, transform_indices = @transform_4, window_bounds = array<i64: 1, 128>}, {transform_indices = @transform_5, window_bounds = array<i64: 128, 128>}, {transform_indices = @transform_6, window_bounds = array<i64: 1, 128>}, {transform_indices = @transform_7, window_bounds = array<i64: 16, 128>}]} {
    %c0 = arith.constant 0 : index
    %c0_0 = arith.constant 0 : index
    %0 = vector.load %arg2[%c0, %c0_0] : memref<16x128xbf16, #tpu.memory_space<vmem>>, vector<16x128xbf16>
    %1 = arith.extf %0 : vector<16x128xbf16> to vector<16x128xf32>
    %c0_1 = arith.constant 0 : index
    %c0_2 = arith.constant 0 : index
    %2 = vector.load %arg3[%c0_1, %c0_2] : memref<1x128xf32, #tpu.memory_space<vmem>>, vector<1x128xf32>
    %3 = vector.broadcast %2 : vector<1x128xf32> to vector<16x128xf32>
    %4 = arith.subf %1, %3 : vector<16x128xf32>
    %c0_3 = arith.constant 0 : index
    %c0_4 = arith.constant 0 : index
    %5 = vector.load %arg4[%c0_3, %c0_4] : memref<1x128xf32, #tpu.memory_space<vmem>>, vector<1x128xf32>
    %c0_5 = arith.constant 0 : index
    %c0_6 = arith.constant 0 : index
    %6 = vector.load %arg5[%c0_5, %c0_6] : memref<1x128xf32, #tpu.memory_space<vmem>>, vector<1x128xf32>
    %7 = arith.mulf %5, %6 : vector<1x128xf32>
    %8 = vector.broadcast %7 : vector<1x128xf32> to vector<16x128xf32>
    %9 = arith.mulf %4, %8 : vector<16x128xf32>
    %c0_7 = arith.constant 0 : index
    %c0_8 = arith.constant 0 : index
    %10 = vector.load %arg6[%c0_7, %c0_8] : memref<1x128xf32, #tpu.memory_space<vmem>>, vector<1x128xf32>
    %11 = vector.broadcast %10 : vector<1x128xf32> to vector<16x128xf32>
    %12 = arith.addf %9, %11 : vector<16x128xf32>
    %13 = arith.truncf %12 : vector<16x128xf32> to vector<16x128xbf16>
    %c0_9 = arith.constant 0 : index
    %c0_10 = arith.constant 0 : index
    %14 = vector.load %arg7[%c0_9, %c0_10] : memref<128x128xbf16, #tpu.memory_space<vmem>>, vector<128x128xbf16>
    %cst = arith.constant dense<0.000000e+00> : vector<16x128xf32>
    %15 = tpu.matmul %13, %14, %cst {dimension_numbers = #tpu.dot_dimension_numbers<[1], [0], [0], [1], [0, 0, 1, 1], [], []>} : vector<16x128xbf16>, vector<128x128xbf16>, vector<16x128xf32> -> vector<16x128xf32>
    %c0_11 = arith.constant 0 : index
    %c0_12 = arith.constant 0 : index
    %16 = vector.load %arg8[%c0_11, %c0_12] : memref<1x128xf32, #tpu.memory_space<vmem>>, vector<1x128xf32>
    %17 = vector.broadcast %16 : vector<1x128xf32> to vector<16x128xf32>
    %18 = arith.addf %15, %17 : vector<16x128xf32>
    %19 = arith.negf %18 : vector<16x128xf32>
    %20 = math.exp %19 : vector<16x128xf32>
    %cst_13 = arith.constant 1.000000e+00 : f32
    %21 = vector.broadcast %cst_13 : f32 to vector<16x128xf32>
    %22 = arith.addf %21, %20 : vector<16x128xf32>
    %23 = arith.divf %21, %22 : vector<16x128xf32>
    %24 = arith.mulf %18, %23 : vector<16x128xf32>
    %25 = arith.truncf %24 : vector<16x128xf32> to vector<16x128xbf16>
    %c0_14 = arith.constant 0 : index
    %c0_15 = arith.constant 0 : index
    %26 = vector.load %arg9[%c0_14, %c0_15] : memref<16x128xbf16, #tpu.memory_space<vmem>>, vector<16x128xbf16>
    tpu.vector_store %arg9[%c0_14, %c0_15], %25 {strides = array<i32>} : memref<16x128xbf16, #tpu.memory_space<vmem>>, vector<16x128xbf16>,
    return
  }
  func.func @transform_0(%arg0: i32, %arg1: i32) -> (i32, i32) {
    %c0_i32 = arith.constant 0 : i32
    %c0_i32_0 = arith.constant 0 : i32
    return %arg0, %c0_i32 : i32, i32
  }
  func.func @transform_1(%arg0: i32, %arg1: i32) -> (i32, i32) {
    %c0_i32 = arith.constant 0 : i32
    %c0_i32_0 = arith.constant 0 : i32
    %c0_i32_1 = arith.constant 0 : i32
    return %c0_i32, %c0_i32_0 : i32, i32
  }
  func.func @transform_2(%arg0: i32, %arg1: i32) -> (i32, i32) {
    %c0_i32 = arith.constant 0 : i32
    %c0_i32_0 = arith.constant 0 : i32
    %c0_i32_1 = arith.constant 0 : i32
    return %c0_i32, %c0_i32_0 : i32, i32
  }
  func.func @transform_3(%arg0: i32, %arg1: i32) -> (i32, i32) {
    %c0_i32 = arith.constant 0 : i32
    %c0_i32_0 = arith.constant 0 : i32
    %c0_i32_1 = arith.constant 0 : i32
    return %c0_i32, %c0_i32_0 : i32, i32
  }
  func.func @transform_4(%arg0: i32, %arg1: i32) -> (i32, i32) {
    %c0_i32 = arith.constant 0 : i32
    %c0_i32_0 = arith.constant 0 : i32
    %c0_i32_1 = arith.constant 0 : i32
    return %c0_i32, %c0_i32_0 : i32, i32
  }
  func.func @transform_5(%arg0: i32, %arg1: i32) -> (i32, i32) {
    %c0_i32 = arith.constant 0 : i32
    %c0_i32_0 = arith.constant 0 : i32
    return %c0_i32, %arg1 : i32, i32
  }
  func.func @transform_6(%arg0: i32, %arg1: i32) -> (i32, i32) {
    %c0_i32 = arith.constant 0 : i32
    %c0_i32_0 = arith.constant 0 : i32
    return %c0_i32, %arg1 : i32, i32
  }
  func.func @transform_7(%arg0: i32, %arg1: i32) -> (i32, i32) {
    %c0_i32 = arith.constant 0 : i32
    return %arg0, %arg1 : i32, i32
  }
}

module attributes {stable_mosaic.version = 11 : i64} {
  func.func @kernel(%arg0: i32, %arg1: i32, %arg2: memref<16x128xbf16, #tpu.memory_space<vmem>>, %arg3: memref<128x128xbf16, #tpu.memory_space<vmem>>, %arg4: memref<1x128xf32, #tpu.memory_space<vmem>>, %arg5: memref<16x128xf32, #tpu.memory_space<vmem>>) attributes {dimension_semantics = [#tpu.dimension_semantics<parallel>, #tpu.dimension_semantics<parallel>], iteration_bounds = array<i64: 1, 1>, scalar_prefetch = 0 : i64, scratch_operands = 0 : i64, tpu.core_type = #tpu.core_type<tc>, window_params = [{transform_indices = @transform_0, window_bounds = array<i64: 16, 128>}, {transform_indices = @transform_1, window_bounds = array<i64: 128, 128>}, {transform_indices = @transform_2, window_bounds = array<i64: 1, 128>}, {transform_indices = @transform_3, window_bounds = array<i64: 16, 128>}]} {
    %c0 = arith.constant 0 : index
    %c0_0 = arith.constant 0 : index
    %0 = vector.load %arg2[%c0, %c0_0] : memref<16x128xbf16, #tpu.memory_space<vmem>>, vector<16x128xbf16>
    %c0_1 = arith.constant 0 : index
    %c0_2 = arith.constant 0 : index
    %1 = vector.load %arg3[%c0_1, %c0_2] : memref<128x128xbf16, #tpu.memory_space<vmem>>, vector<128x128xbf16>
    %cst = arith.constant dense<0.000000e+00> : vector<16x128xf32>
    %2 = tpu.matmul %0, %1, %cst {dimension_numbers = #tpu.dot_dimension_numbers<[1], [0], [0], [1], [0, 0, 1, 1], [], []>} : vector<16x128xbf16>, vector<128x128xbf16>, vector<16x128xf32> -> vector<16x128xf32>
    %c0_3 = arith.constant 0 : index
    %c0_4 = arith.constant 0 : index
    %3 = vector.load %arg4[%c0_3, %c0_4] : memref<1x128xf32, #tpu.memory_space<vmem>>, vector<1x128xf32>
    %4 = vector.broadcast %3 : vector<1x128xf32> to vector<16x128xf32>
    %5 = arith.addf %2, %4 : vector<16x128xf32>
    %c0_5 = arith.constant 0 : index
    %c0_6 = arith.constant 0 : index
    %6 = vector.load %arg5[%c0_5, %c0_6] : memref<16x128xf32, #tpu.memory_space<vmem>>, vector<16x128xf32>
    tpu.vector_store %arg5[%c0_5, %c0_6], %5 {strides = array<i32>} : memref<16x128xf32, #tpu.memory_space<vmem>>, vector<16x128xf32>,
    return
  }
  func.func @transform_0(%arg0: i32, %arg1: i32) -> (i32, i32) {
    %c0_i32 = arith.constant 0 : i32
    %c0_i32_0 = arith.constant 0 : i32
    return %arg0, %c0_i32 : i32, i32
  }
  func.func @transform_1(%arg0: i32, %arg1: i32) -> (i32, i32) {
    %c0_i32 = arith.constant 0 : i32
    %c0_i32_0 = arith.constant 0 : i32
    return %c0_i32, %arg1 : i32, i32
  }
  func.func @transform_2(%arg0: i32, %arg1: i32) -> (i32, i32) {
    %c0_i32 = arith.constant 0 : i32
    %c0_i32_0 = arith.constant 0 : i32
    return %c0_i32, %arg1 : i32, i32
  }
  func.func @transform_3(%arg0: i32, %arg1: i32) -> (i32, i32) {
    %c0_i32 = arith.constant 0 : i32
    return %arg0, %arg1 : i32, i32
  }
}

</mosaic_0001>

<llo_original>
// kernel: tpu_custom_call.1
$region0: #{tpu_custom_call.1}
  #allocation0 [shape = 'u32[]', space=smem, size = 0x4, offset = 0x4, fixed_abs, tag = 'smem constant byte address 0x4 - core index']
  #allocation1 [shape = 'u32[144,128]{1,0:T(1,128)}', space=vmem, size = 0x12000, scoped, tag = 'internal scratch']
  %s0 = inlined_call_operand.hbm [shape: f32[8,128], index: 0, kind: input, shape index: {}]
  %s1 = inlined_call_operand.hbm [shape: f32[8,128], index: 1, kind: output, shape index: {}]
  %s2 = sld [smem:[#allocation0]]
  $region41: #{tpu_custom_call.1} parent=0
    _
  %s4 = ssub.s32 1, %s2
  %s5 = scalar_select 0, %s4, %s2
  $region1: #{tpu_custom_call.1} parent=0
    #allocation2 [shape = 'u8[4096]{0}', space=vmem, size = 0x1000, scoped, tag = 'input window, operand 0, single buffered']
    #allocation3 [shape = 's32[2]{0}', space=sflag, size = 0x8, scoped, tag = 'scoped memory for tpu_custom_call.1']
    #allocation4 [shape = 's32[2]{0}', space=sflag, size = 0x8, scoped, tag = 'scoped memory for tpu_custom_call.1']
    #allocation5 [shape = 'u8[4096]{0}', space=vmem, size = 0x1000, scoped, tag = 'output window, operand 0, single buffered']
    %6 = vsyncpa [#allocation3], 0
    %7 = vsyncpa [#allocation4], 0
    loop: start=0, step=1, limit=4
    $region2: #{tpu_custom_call.1} parent=1 // loop_pre_header
      _
    $region3: #{tpu_custom_call.1} parent=1 // loop_header
      %s9 = sphi 0, %s13
      %p10 = scmp.ge.s32.totalorder %s9, 4
      %s17 = sphi 0, %s17
      %s19 = sphi 0, %s17
      %s20 = sphi 0, %s19
      %s34 = sphi 0, %s20
      %s38 = sphi 0, %s38
      %s40 = sphi 0, %s38
      %s41 = sphi 0, %s40
      %s55 = sphi 0, %s41
    $region4: #{tpu_custom_call.1} parent=1 // loop_header_branch
      %12 = sbr.rel (%p10) target = $region8
    $region5: #{tpu_custom_call.1} parent=1 // loop_body
      %s14 = ssub.s32 %s9, 1
      %s15 = ssub.s32 %s9, 2
      %s16 = sadd.s32 %s9, 1
      %s18 = sadd.s32 %s17, 1
      %p21 = scmp.eq.s32.totalorder %s9, 1
      %p22 = scmp.ne.s32.totalorder %s17, %s19
      %p23 = scmp.eq.s32.totalorder %s9, 0
      %p24 = por %p22, %p23
      %p25 = scmp.ne.s32.totalorder %s17, %s19
      %p26 = scmp.eq.s32.totalorder %s14, 1
      %p27 = por %p25, %p26
      %p28 = scmp.ne.s32.totalorder %s19, %s20
      %p29 = scmp.eq.s32.totalorder %s14, 0
      %p30 = por %p28, %p29
      %p31 = scmp.ne.s32.totalorder %s19, %s20
      %p32 = scmp.eq.s32.totalorder %s15, 1
      %p33 = por %p31, %p32
      %p35 = scmp.ne.s32.totalorder %s20, %s34
      %p36 = scmp.eq.s32.totalorder %s15, 0
      %p37 = por %p35, %p36
      %s39 = sadd.s32 %s38, 1
      %p42 = scmp.eq.s32.totalorder %s9, 1
      %p43 = scmp.ne.s32.totalorder %s38, %s40
      %p44 = scmp.eq.s32.totalorder %s9, 0
      %p45 = por %p43, %p44
      %p46 = scmp.ne.s32.totalorder %s38, %s40
      %p47 = scmp.eq.s32.totalorder %s14, 1
      %p48 = por %p46, %p47
      %p49 = scmp.ne.s32.totalorder %s40, %s41
      %p50 = scmp.eq.s32.totalorder %s14, 0
      %p51 = por %p49, %p50
      %p52 = scmp.ne.s32.totalorder %s40, %s41
      %p53 = scmp.eq.s32.totalorder %s15, 1
      %p54 = por %p52, %p53
      %p56 = scmp.ne.s32.totalorder %s41, %s55
      %p57 = scmp.eq.s32.totalorder %s15, 0
      %p58 = por %p56, %p57
      %p59 = scmp.le.s32.totalorder 1, %s9
      %p60 = scmp.lt.s32.totalorder %s9, 3
      %p61 = pnand %p59, %p60
      %p62 = pneg %p61
      // Predicated region
      $region9: #{tpu_custom_call.1} parent=5 // pred_check
        _
      $region10: #{tpu_custom_call.1} parent=5 // pred_check_branch
        %64 = sbr.rel (%p61) target = $region12
      $region11: #{tpu_custom_call.1} parent=5 // pred_region
        %s65 = ssub.s32 %s9, 1
        // Predicated region
        $region13: #{tpu_custom_call.1} parent=11 // pred_check
          %p66 = pneg %p30
        $region14: #{tpu_custom_call.1} parent=11 // pred_check_branch
          %68 = sbr.rel (%p66) target = $region16
        $region15: #{tpu_custom_call.1} parent=11 // pred_region
          %s70 = ssub.s32 128, 128
          %71 = vsyncadd [#allocation3], %s70
          %s73 = sshll.u32 [#allocation2], 4
          %s74 = int_to_ptr.vmem [resolvable:$true] %s73
          %76 = dma.hbm_to_vmem [thread:$0]  %s0, 128, %s74, [#allocation3]
        $region16: #{tpu_custom_call.1} parent=11 // pred_fallthru
          _
      $region12: #{tpu_custom_call.1} parent=5 // pred_fallthru
        _
      %p77 = scmp.lt.s32.totalorder %s9, 2
      // Predicated region
      $region17: #{tpu_custom_call.1} parent=5 // pred_check
        %p78 = pneg %p77
      $region18: #{tpu_custom_call.1} parent=5 // pred_check_branch
        %80 = sbr.rel (%p78) target = $region20
      $region19: #{tpu_custom_call.1} parent=5 // pred_region
        _
      $region20: #{tpu_custom_call.1} parent=5 // pred_fallthru
        _
      %p81 = scmp.le.s32.totalorder 1, %s9
      %p82 = scmp.lt.s32.totalorder %s9, 3
      %p83 = pnand %p81, %p82
      %p84 = pneg %p83
      // Predicated region
      $region21: #{tpu_custom_call.1} parent=5 // pred_check
        _
      $region22: #{tpu_custom_call.1} parent=5 // pred_check_branch
        %86 = sbr.rel (%p83) target = $region24
      $region23: #{tpu_custom_call.1} parent=5 // pred_region
        %s87 = ssub.s32 %s9, 1
        // Predicated region
        $region25: #{tpu_custom_call.1} parent=23 // pred_check
          %p88 = pneg %p30
        $region26: #{tpu_custom_call.1} parent=23 // pred_check_branch
          %90 = sbr.rel (%p88) target = $region28
        $region27: #{tpu_custom_call.1} parent=23 // pred_region
          %91 = dma.done [#allocation3], 128
        $region28: #{tpu_custom_call.1} parent=23 // pred_fallthru
          _
        %p92 = pneg %p30
        %p93 = pneg %p27
        %p94 = pneg %p51
        %p95 = pneg %p48
        %v96 = vld [vmem:[#allocation2] sm:$0xff]
        %97 = vst [vmem:[#allocation5] sm:$0xff] %v96
        // Predicated region
        $region29: #{tpu_custom_call.1} parent=23 // pred_check
          %p98 = pneg %p48
        $region30: #{tpu_custom_call.1} parent=23 // pred_check_branch
          %100 = sbr.rel (%p98) target = $region32
        $region31: #{tpu_custom_call.1} parent=23 // pred_region
          %s102 = ssub.s32 128, 128
          %103 = vsyncadd [#allocation4], %s102
          %s105 = sshll.u32 [#allocation5], 4
          %s106 = int_to_ptr.vmem [resolvable:$true] %s105
          %108 = dma.vmem_to_hbm [thread:$0]  %s106, 128, %s1, [#allocation4]
        $region32: #{tpu_custom_call.1} parent=23 // pred_fallthru
          _
        // Predicated region
        $region33: #{tpu_custom_call.1} parent=23 // pred_check
          %p109 = pneg %p48
        $region34: #{tpu_custom_call.1} parent=23 // pred_check_branch
          %111 = sbr.rel (%p109) target = $region36
        $region35: #{tpu_custom_call.1} parent=23 // pred_region
          %112 = dma.done [#allocation4], 128
        $region36: #{tpu_custom_call.1} parent=23 // pred_fallthru
          _
      $region24: #{tpu_custom_call.1} parent=5 // pred_fallthru
        _
      %p113 = scmp.le.s32.totalorder 2, %s9
      // Predicated region
      $region37: #{tpu_custom_call.1} parent=5 // pred_check
        %p114 = pneg %p113
      $region38: #{tpu_custom_call.1} parent=5 // pred_check_branch
        %116 = sbr.rel (%p114) target = $region40
      $region39: #{tpu_custom_call.1} parent=5 // pred_region
        %s117 = ssub.s32 %s9, 2
      $region40: #{tpu_custom_call.1} parent=5 // pred_fallthru
        _
    $region6: #{tpu_custom_call.1} parent=1 // loop_footer
      %s13 = sadd.s32 1, %s9
    $region7: #{tpu_custom_call.1} parent=1 // loop_footer_branch
      %8 = sbr.rel target = $region3
    $region8: #{tpu_custom_call.1} parent=1 // loop_exit
      _
    %118 = vsyncpa [#allocation3], 1
    %s119 = scalar_lea.sflag [#allocation3], 1
    %120 = vsyncpa %s119, 1
    %121 = vsyncpa [#allocation4], 1
    %s122 = scalar_lea.sflag [#allocation4], 1
    %123 = vsyncpa %s122, 1

// kernel: mlp_forward.5
$region0: #{mlp_forward.5}
  #allocation0 [shape = 'u32[]', space=smem, size = 0x4, offset = 0x4, fixed_abs, tag = 'smem constant byte address 0x4 - core index']
  #allocation1 [shape = 'u32[144,128]{1,0:T(1,128)}', space=vmem, size = 0x12000, scoped, tag = 'internal scratch']
  %s0 = inlined_call_operand.vmem [shape: bf16[16,128], index: 0, kind: input, shape index: {}]
  %s1 = inlined_call_operand.vmem [shape: f32[1,128], index: 1, kind: input, shape index: {}]
  %s2 = inlined_call_operand.vmem [shape: f32[1,128], index: 2, kind: input, shape index: {}]
  %s3 = inlined_call_operand.vmem [shape: f32[1,128], index: 3, kind: input, shape index: {}]
  %s4 = inlined_call_operand.vmem [shape: f32[1,128], index: 4, kind: input, shape index: {}]
  %s5 = inlined_call_operand.vmem [shape: bf16[128,128], index: 5, kind: input, shape index: {}]
  %s6 = inlined_call_operand.vmem [shape: f32[1,128], index: 6, kind: input, shape index: {}]
  %s7 = inlined_call_operand.vmem [shape: bf16[16,128], index: 7, kind: output, shape index: {0}]
  %s8 = inlined_call_operand.vmem [shape: f32[1,128], index: 8, kind: output, shape index: {1}]
  %s9 = inlined_call_operand.vmem [shape: f32[1,128], index: 9, kind: output, shape index: {2}]
  %10 = xla_tuple %s7, %s8, %s9
  %s11 = sld [smem:[#allocation0]]
  $region66: #{mlp_forward.5} parent=0
    _
  %s13 = ssub.s32 1, %s11
  %s14 = scalar_select 0, %s13, %s11
  // Predicated region
  $region2: #{mlp_forward.5} parent=0 // pred_check
    _
  $region3: #{mlp_forward.5} parent=0 // pred_check_branch
    %16 = sbr.rel (0) target = $region5
  $region4: #{mlp_forward.5} parent=0 // pred_region
    _
  $region5: #{mlp_forward.5} parent=0 // pred_fallthru
    _
  // Predicated region
  $region6: #{mlp_forward.5} parent=0 // pred_check
    _
  $region7: #{mlp_forward.5} parent=0 // pred_check_branch
    %18 = sbr.rel (0) target = $region9
  $region8: #{mlp_forward.5} parent=0 // pred_region
    _
  $region9: #{mlp_forward.5} parent=0 // pred_fallthru
    _
  // Predicated region
  $region10: #{mlp_forward.5} parent=0 // pred_check
    _
  $region11: #{mlp_forward.5} parent=0 // pred_check_branch
    %20 = sbr.rel (0) target = $region13
  $region12: #{mlp_forward.5} parent=0 // pred_region
    _
  $region13: #{mlp_forward.5} parent=0 // pred_fallthru
    _
  // Predicated region
  $region14: #{mlp_forward.5} parent=0 // pred_check
    _
  $region15: #{mlp_forward.5} parent=0 // pred_check_branch
    %22 = sbr.rel (0) target = $region17
  $region16: #{mlp_forward.5} parent=0 // pred_region
    _
  $region17: #{mlp_forward.5} parent=0 // pred_fallthru
    _
  // Predicated region
  $region18: #{mlp_forward.5} parent=0 // pred_check
    _
  $region19: #{mlp_forward.5} parent=0 // pred_check_branch
    %24 = sbr.rel (0) target = $region21
  $region20: #{mlp_forward.5} parent=0 // pred_region
    _
  $region21: #{mlp_forward.5} parent=0 // pred_fallthru
    _
  // Predicated region
  $region22: #{mlp_forward.5} parent=0 // pred_check
    _
  $region23: #{mlp_forward.5} parent=0 // pred_check_branch
    %26 = sbr.rel (0) target = $region25
  $region24: #{mlp_forward.5} parent=0 // pred_region
    _
  $region25: #{mlp_forward.5} parent=0 // pred_fallthru
    _
  // Predicated region
  $region26: #{mlp_forward.5} parent=0 // pred_check
    _
  $region27: #{mlp_forward.5} parent=0 // pred_check_branch
    %28 = sbr.rel (0) target = $region29
  $region28: #{mlp_forward.5} parent=0 // pred_region
    _
  $region29: #{mlp_forward.5} parent=0 // pred_fallthru
    _
  %v30 = vld [vmem:[%s0] sm:$0xf]
  %v31 = vld [vmem:[%s0 + $0x4] sm:$0xf]
  %v32 = vunpack.c.l.bf16 %v30
  %v33 = vunpack.c.l.bf16 %v31
  %v34 = vld [vmem:[%s1] sm:$0x1]
  %v36 = vlaneseq
  %v37 = vshrl.u32 %v36, 7
  %v38 = vsub.s32 0, %v37
  %v39 = vrot.slane %v34, %v38
  %v41 = vsub.f32 %v32, %v39
  %v42 = vsub.f32 %v33, %v39
  %v43 = vld [vmem:[%s2] sm:$0x1]
  %v44 = vld [vmem:[%s3] sm:$0x1]
  %v45 = vmul.f32 %v43, %v44
  %v47 = vlaneseq
  %v48 = vshrl.u32 %v47, 7
  %v49 = vsub.s32 0, %v48
  %v50 = vrot.slane %v45, %v49
  %v52 = vmul.f32 %v41, %v50
  %v53 = vmul.f32 %v42, %v50
  %v54 = vld [vmem:[%s4] sm:$0x1]
  %v56 = vlaneseq
  %v57 = vshrl.u32 %v56, 7
  %v58 = vsub.s32 0, %v57
  %v59 = vrot.slane %v54, %v58
  %v61 = vadd.f32 %v52, %v59
  %v62 = vadd.f32 %v53, %v59
  %v63 = vpack.c.bf16 %v62, %v61
  %v64 = vld [vmem:[%s5] sm:$0xf]
  %v65 = vld [vmem:[%s5 + $0x4] sm:$0xf]
  %v66 = vld [vmem:[%s5 + $0x8] sm:$0xf]
  %v67 = vld [vmem:[%s5 + $0xc] sm:$0xf]
  %v68 = vld [vmem:[%s5 + $0x10] sm:$0xf]
  %v69 = vld [vmem:[%s5 + $0x14] sm:$0xf]
  %v70 = vld [vmem:[%s5 + $0x18] sm:$0xf]
  %v71 = vld [vmem:[%s5 + $0x1c] sm:$0xf]
  %v72 = vld [vmem:[%s5 + $0x20] sm:$0xf]
  %v73 = vld [vmem:[%s5 + $0x24] sm:$0xf]
  %v74 = vld [vmem:[%s5 + $0x28] sm:$0xf]
  %v75 = vld [vmem:[%s5 + $0x2c] sm:$0xf]
  %v76 = vld [vmem:[%s5 + $0x30] sm:$0xf]
  %v77 = vld [vmem:[%s5 + $0x34] sm:$0xf]
  %v78 = vld [vmem:[%s5 + $0x38] sm:$0xf]
  %v79 = vld [vmem:[%s5 + $0x3c] sm:$0xf]
  %v80 = vld [vmem:[%s6] sm:$0x1]
  %v82 = vlaneseq
  %v83 = vshrl.u32 %v82, 7
  %v84 = vsub.s32 0, %v83
  %v85 = vrot.slane %v80, %v84
  %v103 = vunpack.c.l.b16 %v64
  %v104 = vunpack.c.l.b16 %v65
  %v105 = vunpack.c.l.b16 %v66
  %v106 = vunpack.c.l.b16 %v67
  %v107 = vunpack.c.l.b16 %v68
  %v108 = vunpack.c.l.b16 %v69
  %v109 = vunpack.c.l.b16 %v70
  %v110 = vunpack.c.l.b16 %v71
  %v111 = vunpack.c.l.b16 %v72
  %v112 = vunpack.c.l.b16 %v73
  %v113 = vunpack.c.l.b16 %v74
  %v114 = vunpack.c.l.b16 %v75
  %v115 = vunpack.c.l.b16 %v76
  %v116 = vunpack.c.l.b16 %v77
  %v117 = vunpack.c.l.b16 %v78
  %v118 = vunpack.c.l.b16 %v79
  %v119 = vpack.c.b16 %v104, %v103
  %v120 = vpack.c.b16 %v106, %v105
  %v121 = vpack.c.b16 %v108, %v107
  %v122 = vpack.c.b16 %v110, %v109
  %v123 = vpack.c.b16 %v112, %v111
  %v124 = vpack.c.b16 %v114, %v113
  %v125 = vpack.c.b16 %v116, %v115
  %v126 = vpack.c.b16 %v118, %v117
  %135 = vmatprep.subr.bf16.mxu0 0
  %136 = vmatpush1.bf16.msra.mxu0 %v119
  %137 = vmatprep.subr.bf16.mxu0 0
  %138 = vmatpush1.bf16.msra.mxu0 %v120
  %139 = vmatprep.subr.bf16.mxu0 0
  %140 = vmatpush1.bf16.msra.mxu0 %v121
  %141 = vmatprep.subr.bf16.mxu0 0
  %142 = vmatpush1.bf16.msra.mxu0 %v122
  %143 = vmatprep.subr.bf16.mxu0 0
  %144 = vmatpush1.bf16.msra.mxu0 %v123
  %145 = vmatprep.subr.bf16.mxu0 0
  %146 = vmatpush1.bf16.msra.mxu0 %v124
  %147 = vmatprep.subr.bf16.mxu0 0
  %148 = vmatpush1.bf16.msra.mxu0 %v125
  %149 = vmatprep.subr.bf16.mxu0 0
  %150 = vmatpush1.bf16.msra.mxu0 %v126
  %151 = vmatprep.subr.bf16.mxu0 0
  %152 = vmatpush1.bf16.msra.mxu0 0
  %153 = vmatprep.subr.bf16.mxu0 0
  %154 = vmatpush1.bf16.msra.mxu0 0
  %155 = vmatprep.subr.bf16.mxu0 0
  %156 = vmatpush1.bf16.msra.mxu0 0
  %157 = vmatprep.subr.bf16.mxu0 0
  %158 = vmatpush1.bf16.msra.mxu0 0
  %159 = vmatprep.subr.bf16.mxu0 0
  %160 = vmatpush1.bf16.msra.mxu0 0
  %161 = vmatprep.subr.bf16.mxu0 0
  %162 = vmatpush1.bf16.msra.mxu0 0
  %163 = vmatprep.subr.bf16.mxu0 0
  %164 = vmatpush1.bf16.msra.mxu0 0
  %165 = vmatprep.subr.bf16.mxu0 0
  %166 = vmatpush1.bf16.msra.mxu0 0
  %167 = vmatprep.mubr.bf16.mxu0 0
  %168 = vmatmul.mubr.bf16.gmra.mrb[0].mxu0 %v63
  %v169 = vpop.f32.mrb[0].mxu0
  %v170 = vadd.f32 %v85, %v169
  %v171 = vpop.f32.mrb[0].mxu0
  %v172 = vpop.f32.mrb[0].mxu0
  %v173 = vadd.f32 %v85, %v172
  %v174 = vpop.f32.mrb[0].mxu0
  %175 = vdwg.mxu0
  %v176 = vxor.u32 %v170, 2147483648
  %v177 = vxor.u32 %v173, 2147483648
  %v178 = vmul.f32 %v176, 1.442695
  %v179 = vpow.pop %v178
  %v180 = vmul.f32 %v177, 1.442695
  %v181 = vpow.pop %v180
  %v182 = vadd.f32 %v179, 1.0
  %v183 = vadd.f32 %v181, 1.0
  %v184 = vrcp.pop %v182
  %v185 = vmul.f32 1.0, %v184
  %v186 = vrcp.pop %v183
  %v187 = vmul.f32 1.0, %v186
  %v188 = vmul.f32 %v170, %v185
  %v189 = vmul.f32 %v173, %v187
  %v190 = vpack.c.bf16 %v189, %v188
  %v192 = vunpack.c.l.b16 %v190
  %v193 = vunpack.c.h.b16 %v190
  %v194 = vpack.c.b16 %v192, %v192
  %v195 = vpack.c.b16 %v193, %v193
  %198 = vst [vmem:[%s7] sm:$0xf] %v194
  %199 = vst [vmem:[%s7 + $0x4] sm:$0xf] %v195
  %v200 = vunpack.c.l.bf16 %v190
  %v201 = vunpack.c.h.bf16 %v190
  %p202 = scmp.eq.s32.totalorder 0, 0
  // Predicated region
  $region30: #{mlp_forward.5} parent=0 // pred_check
    %p203 = pneg %p202
  $region31: #{mlp_forward.5} parent=0 // pred_check_branch
    %205 = sbr.rel (%p203) target = $region33
  $region32: #{mlp_forward.5} parent=0 // pred_region
    %206 = vst [vmem:[%s8] sm:$0x1] 0.0
    %207 = vst [vmem:[%s9] sm:$0x1] 0.0
  $region33: #{mlp_forward.5} parent=0 // pred_fallthru
    _
  %p208 = scmp.ne.s32.totalorder 0, 0
  // Predicated region
  $region34: #{mlp_forward.5} parent=0 // pred_check
    %p209 = pneg %p208
  $region35: #{mlp_forward.5} parent=0 // pred_check_branch
    %211 = sbr.rel (%p209) target = $region37
  $region36: #{mlp_forward.5} parent=0 // pred_region
    %v212 = vld [vmem:[%s8] sm:$0x1]
    %v213 = vadd.f32 %v200, %v201
    %v214 = vrot.slane %v213, 4
    %v215 = vadd.f32 %v213, %v214
    %v216 = vrot.slane %v215, 2
    %v217 = vadd.f32 %v215, %v216
    %v218 = vrot.slane %v217, 1
    %v219 = vadd.f32 %v217, %v218
    %v220 = vadd.f32 %v212, %v219
    %221 = vst [vmem:[%s8] sm:$0x1] %v220
    %v222 = vld [vmem:[%s9] sm:$0x1]
    %v223 = vmul.f32 %v200, %v200
    %v224 = vmul.f32 %v201, %v201
    %v225 = vadd.f32 %v223, %v224
    %v226 = vrot.slane %v225, 4
    %v227 = vadd.f32 %v225, %v226
    %v228 = vrot.slane %v227, 2
    %v229 = vadd.f32 %v227, %v228
    %v230 = vrot.slane %v229, 1
    %v231 = vadd.f32 %v229, %v230
    %v232 = vadd.f32 %v222, %v231
    %233 = vst [vmem:[%s9] sm:$0x1] %v232
  $region37: #{mlp_forward.5} parent=0 // pred_fallthru
    _
  // Predicated region
  $region38: #{mlp_forward.5} parent=0 // pred_check
    %p234 = pneg %p202
  $region39: #{mlp_forward.5} parent=0 // pred_check_branch
    %236 = sbr.rel (%p234) target = $region41
  $region40: #{mlp_forward.5} parent=0 // pred_region
    %v237 = vlaneseq
    %v238 = vshrl.u32 %v237, 7
    %v239 = vadd.s32 %v238, 8
    %s240 = smul.u32 0, 16
    %v241 = vstv %s240
    %v242 = vadd.s32 %v238, %v241
    %v243 = vadd.s32 %v239, %v241
    %vm244 = vcmp.lt.s32.totalorder %v242, 8
    %vm245 = vcmp.lt.s32.totalorder %v243, 8
    %v246 = vsel %vm244, 1, 0
    %v247 = vsel %vm245, 1, 0
    %vm248 = vcmp.eq.s32.totalorder %v246, 1
    %vm249 = vcmp.eq.s32.totalorder %v247, 1
    %v250 = vsel %vm248, %v200, 0.0
    %v251 = vsel %vm249, %v201, 0.0
    %v252 = vld [vmem:[%s8] sm:$0x1]
    %v253 = vadd.f32 %v250, %v251
    %v254 = vrot.slane %v253, 4
    %v255 = vadd.f32 %v253, %v254
    %v256 = vrot.slane %v255, 2
    %v257 = vadd.f32 %v255, %v256
    %v258 = vrot.slane %v257, 1
    %v259 = vadd.f32 %v257, %v258
    %v260 = vadd.f32 %v252, %v259
    %261 = vst [vmem:[%s8] sm:$0x1] %v260
    %v262 = vld [vmem:[%s9] sm:$0x1]
    %v263 = vmul.f32 %v250, %v250
    %v264 = vmul.f32 %v251, %v251
    %v265 = vadd.f32 %v263, %v264
    %v266 = vrot.slane %v265, 4
    %v267 = vadd.f32 %v265, %v266
    %v268 = vrot.slane %v267, 2
    %v269 = vadd.f32 %v267, %v268
    %v270 = vrot.slane %v269, 1
    %v271 = vadd.f32 %v269, %v270
    %v272 = vadd.f32 %v262, %v271
    %273 = vst [vmem:[%s9] sm:$0x1] %v272
    %v274 = vld [vmem:[%s8] sm:$0x1]
    %v275 = vmul.f32 %v274, 0.125
    %v276 = vld [vmem:[%s9] sm:$0x1]
    %v277 = vmul.f32 %v276, 0.125
    %v278 = vmul.f32 %v275, %v275
    %v279 = vsub.f32 %v277, %v278
    %v280 = vmax.f32 %v279, 0.0
    %281 = vst [vmem:[%s8] sm:$0x1] %v275
    %v282 = vadd.f32 %v280, 1e-05
    %v283 = vrsqrt.pop %v282
    %284 = vst [vmem:[%s9] sm:$0x1] %v283
  $region41: #{mlp_forward.5} parent=0 // pred_fallthru
    _
  // Predicated region
  $region42: #{mlp_forward.5} parent=0 // pred_check
    _
  $region43: #{mlp_forward.5} parent=0 // pred_check_branch
    %286 = sbr.rel (0) target = $region45
  $region44: #{mlp_forward.5} parent=0 // pred_region
    _
  $region45: #{mlp_forward.5} parent=0 // pred_fallthru
    _
  // Predicated region
  $region46: #{mlp_forward.5} parent=0 // pred_check
    _
  $region47: #{mlp_forward.5} parent=0 // pred_check_branch
    %288 = sbr.rel (0) target = $region49
  $region48: #{mlp_forward.5} parent=0 // pred_region
    _
  $region49: #{mlp_forward.5} parent=0 // pred_fallthru
    _
  // Predicated region
  $region50: #{mlp_forward.5} parent=0 // pred_check
    _
  $region51: #{mlp_forward.5} parent=0 // pred_check_branch
    %290 = sbr.rel (0) target = $region53
  $region52: #{mlp_forward.5} parent=0 // pred_region
    _
  $region53: #{mlp_forward.5} parent=0 // pred_fallthru
    _
  // Predicated region
  $region54: #{mlp_forward.5} parent=0 // pred_check
    _
  $region55: #{mlp_forward.5} parent=0 // pred_check_branch
    %292 = sbr.rel (0) target = $region57
  $region56: #{mlp_forward.5} parent=0 // pred_region
    _
  $region57: #{mlp_forward.5} parent=0 // pred_fallthru
    _
  // Predicated region
  $region58: #{mlp_forward.5} parent=0 // pred_check
    _
  $region59: #{mlp_forward.5} parent=0 // pred_check_branch
    %294 = sbr.rel (0) target = $region61
  $region60: #{mlp_forward.5} parent=0 // pred_region
    _
  $region61: #{mlp_forward.5} parent=0 // pred_fallthru
    _
  // Predicated region
  $region62: #{mlp_forward.5} parent=0 // pred_check
    _
  $region63: #{mlp_forward.5} parent=0 // pred_check_branch
    %296 = sbr.rel (0) target = $region65
  $region64: #{mlp_forward.5} parent=0 // pred_region
    _
  $region65: #{mlp_forward.5} parent=0 // pred_fallthru
    _

// kernel: mlp_forward.4
$region0: #{mlp_forward.4}
  #allocation0 [shape = 'u32[]', space=smem, size = 0x4, offset = 0x4, fixed_abs, tag = 'smem constant byte address 0x4 - core index']
  #allocation1 [shape = 'u32[144,128]{1,0:T(1,128)}', space=vmem, size = 0x12000, scoped, tag = 'internal scratch']
  %s0 = inlined_call_operand.vmem [shape: bf16[16,128], index: 0, kind: input, shape index: {}]
  %s1 = inlined_call_operand.hbm [shape: bf16[128,128], index: 1, kind: input, shape index: {}]
  %s2 = inlined_call_operand.hbm [shape: f32[1,128], index: 2, kind: input, shape index: {}]
  %s3 = inlined_call_operand.vmem [shape: bf16[16,128], index: 3, kind: output, shape index: {0}]
  %s4 = inlined_call_operand.vmem [shape: f32[1,128], index: 4, kind: output, shape index: {1}]
  %s5 = inlined_call_operand.vmem [shape: f32[1,128], index: 5, kind: output, shape index: {2}]
  %6 = xla_tuple %s3, %s4, %s5
  %s7 = sld [smem:[#allocation0]]
  $region58: #{mlp_forward.4} parent=0
    _
  %s9 = ssub.s32 1, %s7
  %s10 = scalar_select 0, %s9, %s7
  $region1: #{mlp_forward.4} parent=0
    #allocation2 [shape = 'u8[32768]{0}', space=vmem, size = 0x8000, scoped, tag = 'input window, operand 1, single buffered']
    #allocation3 [shape = 's32[1]{0}', space=sflag, size = 0x4, scoped, tag = 'scoped memory for mlp_forward.4']
    #allocation4 [shape = 'u8[512]{0}', space=vmem, size = 0x400, scoped, tag = 'input window, operand 2, single buffered']
    #allocation5 [shape = 's32[1]{0}', space=sflag, size = 0x4, scoped, tag = 'scoped memory for mlp_forward.4']
    %11 = vsyncpa [#allocation3], 0
    %12 = vsyncpa [#allocation5], 0
    // Predicated region
    $region2: #{mlp_forward.4} parent=1 // pred_check
      _
    $region3: #{mlp_forward.4} parent=1 // pred_check_branch
      %14 = sbr.rel (0) target = $region5
    $region4: #{mlp_forward.4} parent=1 // pred_region
      _
    $region5: #{mlp_forward.4} parent=1 // pred_fallthru
      _
    // Predicated region
    $region6: #{mlp_forward.4} parent=1 // pred_check
      _
    $region7: #{mlp_forward.4} parent=1 // pred_check_branch
      %16 = sbr.rel (0) target = $region9
    $region8: #{mlp_forward.4} parent=1 // pred_region
      %s18 = ssub.s32 1024, 1024
      %19 = vsyncadd [#allocation3], %s18
      %s20 = sshll.u32 [#allocation2], 4
      %s21 = int_to_ptr.vmem [resolvable:$true] %s20
      %26 = dma.hbm_to_vmem [thread:$0]  %s1, 1024, %s21, [#allocation3], 64, 64, 4
    $region9: #{mlp_forward.4} parent=1 // pred_fallthru
      _
    // Predicated region
    $region10: #{mlp_forward.4} parent=1 // pred_check
      _
    $region11: #{mlp_forward.4} parent=1 // pred_check_branch
      %28 = sbr.rel (0) target = $region13
    $region12: #{mlp_forward.4} parent=1 // pred_region
      %s30 = ssub.s32 16, 16
      %31 = vsyncadd [#allocation5], %s30
      %s33 = sshll.u32 [#allocation4], 4
      %s34 = int_to_ptr.vmem [resolvable:$true] %s33
      %36 = dma.hbm_to_vmem [thread:$0]  %s2, 16, %s34, [#allocation5]
    $region13: #{mlp_forward.4} parent=1 // pred_fallthru
      _
    // Predicated region
    $region14: #{mlp_forward.4} parent=1 // pred_check
      _
    $region15: #{mlp_forward.4} parent=1 // pred_check_branch
      %38 = sbr.rel (0) target = $region17
    $region16: #{mlp_forward.4} parent=1 // pred_region
      %39 = dma.done [#allocation3], 1024
    $region17: #{mlp_forward.4} parent=1 // pred_fallthru
      _
    // Predicated region
    $region18: #{mlp_forward.4} parent=1 // pred_check
      _
    $region19: #{mlp_forward.4} parent=1 // pred_check_branch
      %41 = sbr.rel (0) target = $region21
    $region20: #{mlp_forward.4} parent=1 // pred_region
      %42 = dma.done [#allocation5], 16
    $region21: #{mlp_forward.4} parent=1 // pred_fallthru
      _
    %v44 = vld [vmem:[%s0] sm:$0xf]
    %v45 = vld [vmem:[%s0 + $0x4] sm:$0xf]
    %v46 = vld [vmem:[#allocation2] sm:$0xf]
    %v47 = vld [vmem:[#allocation2 + $0x4] sm:$0xf]
    %v48 = vld [vmem:[#allocation2 + $0x8] sm:$0xf]
    %v49 = vld [vmem:[#allocation2 + $0xc] sm:$0xf]
    %v50 = vld [vmem:[#allocation2 + $0x10] sm:$0xf]
    %v51 = vld [vmem:[#allocation2 + $0x14] sm:$0xf]
    %v52 = vld [vmem:[#allocation2 + $0x18] sm:$0xf]
    %v53 = vld [vmem:[#allocation2 + $0x1c] sm:$0xf]
    %v54 = vld [vmem:[#allocation2 + $0x20] sm:$0xf]
    %v55 = vld [vmem:[#allocation2 + $0x24] sm:$0xf]
    %v56 = vld [vmem:[#allocation2 + $0x28] sm:$0xf]
    %v57 = vld [vmem:[#allocation2 + $0x2c] sm:$0xf]
    %v58 = vld [vmem:[#allocation2 + $0x30] sm:$0xf]
    %v59 = vld [vmem:[#allocation2 + $0x34] sm:$0xf]
    %v60 = vld [vmem:[#allocation2 + $0x38] sm:$0xf]
    %v61 = vld [vmem:[#allocation2 + $0x3c] sm:$0xf]
    %v62 = vld [vmem:[#allocation4] sm:$0x1]
    %v64 = vlaneseq
    %v65 = vshrl.u32 %v64, 7
    %v66 = vsub.s32 0, %v65
    %v67 = vrot.slane %v62, %v66
    %v71 = vunpack.c.l.b16 %v44
    %v72 = vunpack.c.l.b16 %v45
    %v73 = vpack.c.b16 %v72, %v71
    %v91 = vunpack.c.l.b16 %v46
    %v92 = vunpack.c.l.b16 %v47
    %v93 = vunpack.c.l.b16 %v48
    %v94 = vunpack.c.l.b16 %v49
    %v95 = vunpack.c.l.b16 %v50
    %v96 = vunpack.c.l.b16 %v51
    %v97 = vunpack.c.l.b16 %v52
    %v98 = vunpack.c.l.b16 %v53
    %v99 = vunpack.c.l.b16 %v54
    %v100 = vunpack.c.l.b16 %v55
    %v101 = vunpack.c.l.b16 %v56
    %v102 = vunpack.c.l.b16 %v57
    %v103 = vunpack.c.l.b16 %v58
    %v104 = vunpack.c.l.b16 %v59
    %v105 = vunpack.c.l.b16 %v60
    %v106 = vunpack.c.l.b16 %v61
    %v107 = vpack.c.b16 %v92, %v91
    %v108 = vpack.c.b16 %v94, %v93
    %v109 = vpack.c.b16 %v96, %v95
    %v110 = vpack.c.b16 %v98, %v97
    %v111 = vpack.c.b16 %v100, %v99
    %v112 = vpack.c.b16 %v102, %v101
    %v113 = vpack.c.b16 %v104, %v103
    %v114 = vpack.c.b16 %v106, %v105
    %123 = vmatprep.subr.bf16.mxu0 0
    %124 = vmatpush1.bf16.msra.mxu0 %v107
    %125 = vmatprep.subr.bf16.mxu0 0
    %126 = vmatpush1.bf16.msra.mxu0 %v108
    %127 = vmatprep.subr.bf16.mxu0 0
    %128 = vmatpush1.bf16.msra.mxu0 %v109
    %129 = vmatprep.subr.bf16.mxu0 0
    %130 = vmatpush1.bf16.msra.mxu0 %v110
    %131 = vmatprep.subr.bf16.mxu0 0
    %132 = vmatpush1.bf16.msra.mxu0 %v111
    %133 = vmatprep.subr.bf16.mxu0 0
    %134 = vmatpush1.bf16.msra.mxu0 %v112
    %135 = vmatprep.subr.bf16.mxu0 0
    %136 = vmatpush1.bf16.msra.mxu0 %v113
    %137 = vmatprep.subr.bf16.mxu0 0
    %138 = vmatpush1.bf16.msra.mxu0 %v114
    %139 = vmatprep.subr.bf16.mxu0 0
    %140 = vmatpush1.bf16.msra.mxu0 0
    %141 = vmatprep.subr.bf16.mxu0 0
    %142 = vmatpush1.bf16.msra.mxu0 0
    %143 = vmatprep.subr.bf16.mxu0 0
    %144 = vmatpush1.bf16.msra.mxu0 0
    %145 = vmatprep.subr.bf16.mxu0 0
    %146 = vmatpush1.bf16.msra.mxu0 0
    %147 = vmatprep.subr.bf16.mxu0 0
    %148 = vmatpush1.bf16.msra.mxu0 0
    %149 = vmatprep.subr.bf16.mxu0 0
    %150 = vmatpush1.bf16.msra.mxu0 0
    %151 = vmatprep.subr.bf16.mxu0 0
    %152 = vmatpush1.bf16.msra.mxu0 0
    %153 = vmatprep.subr.bf16.mxu0 0
    %154 = vmatpush1.bf16.msra.mxu0 0
    %155 = vmatprep.mubr.bf16.mxu0 0
    %156 = vmatmul.mubr.bf16.gmra.mrb[0].mxu0 %v73
    %v157 = vpop.f32.mrb[0].mxu0
    %v158 = vadd.f32 %v67, %v157
    %v159 = vpop.f32.mrb[0].mxu0
    %v160 = vpop.f32.mrb[0].mxu0
    %v161 = vadd.f32 %v67, %v160
    %v162 = vpop.f32.mrb[0].mxu0
    %163 = vdwg.mxu0
    %v164 = vxor.u32 %v158, 2147483648
    %v165 = vxor.u32 %v161, 2147483648
    %v166 = vmul.f32 %v164, 1.442695
    %v167 = vpow.pop %v166
    %v168 = vmul.f32 %v165, 1.442695
    %v169 = vpow.pop %v168
    %v170 = vadd.f32 %v167, 1.0
    %v171 = vadd.f32 %v169, 1.0
    %v172 = vrcp.pop %v170
    %v173 = vmul.f32 1.0, %v172
    %v174 = vrcp.pop %v171
    %v175 = vmul.f32 1.0, %v174
    %v176 = vmul.f32 %v158, %v173
    %v177 = vmul.f32 %v161, %v175
    %v178 = vpack.c.bf16 %v177, %v176
    %v180 = vunpack.c.l.b16 %v178
    %v181 = vunpack.c.h.b16 %v178
    %v182 = vpack.c.b16 %v180, %v180
    %v183 = vpack.c.b16 %v181, %v181
    %186 = vst [vmem:[%s3] sm:$0xf] %v182
    %187 = vst [vmem:[%s3 + $0x4] sm:$0xf] %v183
    %v188 = vunpack.c.l.bf16 %v178
    %v189 = vunpack.c.h.bf16 %v178
    %p190 = scmp.eq.s32.totalorder 0, 0
    // Predicated region
    $region22: #{mlp_forward.4} parent=1 // pred_check
      %p191 = pneg %p190
    $region23: #{mlp_forward.4} parent=1 // pred_check_branch
      %193 = sbr.rel (%p191) target = $region25
    $region24: #{mlp_forward.4} parent=1 // pred_region
      %194 = vst [vmem:[%s4] sm:$0x1] 0.0
      %195 = vst [vmem:[%s5] sm:$0x1] 0.0
    $region25: #{mlp_forward.4} parent=1 // pred_fallthru
      _
    %p196 = scmp.ne.s32.totalorder 0, 0
    // Predicated region
    $region26: #{mlp_forward.4} parent=1 // pred_check
      %p197 = pneg %p196
    $region27: #{mlp_forward.4} parent=1 // pred_check_branch
      %199 = sbr.rel (%p197) target = $region29
    $region28: #{mlp_forward.4} parent=1 // pred_region
      %v200 = vld [vmem:[%s4] sm:$0x1]
      %v201 = vadd.f32 %v188, %v189
      %v202 = vrot.slane %v201, 4
      %v203 = vadd.f32 %v201, %v202
      %v204 = vrot.slane %v203, 2
      %v205 = vadd.f32 %v203, %v204
      %v206 = vrot.slane %v205, 1
      %v207 = vadd.f32 %v205, %v206
      %v208 = vadd.f32 %v200, %v207
      %209 = vst [vmem:[%s4] sm:$0x1] %v208
      %v210 = vld [vmem:[%s5] sm:$0x1]
      %v211 = vmul.f32 %v188, %v188
      %v212 = vmul.f32 %v189, %v189
      %v213 = vadd.f32 %v211, %v212
      %v214 = vrot.slane %v213, 4
      %v215 = vadd.f32 %v213, %v214
      %v216 = vrot.slane %v215, 2
      %v217 = vadd.f32 %v215, %v216
      %v218 = vrot.slane %v217, 1
      %v219 = vadd.f32 %v217, %v218
      %v220 = vadd.f32 %v210, %v219
      %221 = vst [vmem:[%s5] sm:$0x1] %v220
    $region29: #{mlp_forward.4} parent=1 // pred_fallthru
      _
    // Predicated region
    $region30: #{mlp_forward.4} parent=1 // pred_check
      %p222 = pneg %p190
    $region31: #{mlp_forward.4} parent=1 // pred_check_branch
      %224 = sbr.rel (%p222) target = $region33
    $region32: #{mlp_forward.4} parent=1 // pred_region
      %v225 = vlaneseq
      %v226 = vshrl.u32 %v225, 7
      %v227 = vadd.s32 %v226, 8
      %s228 = smul.u32 0, 16
      %v229 = vstv %s228
      %v230 = vadd.s32 %v226, %v229
      %v231 = vadd.s32 %v227, %v229
      %vm232 = vcmp.lt.s32.totalorder %v230, 8
      %vm233 = vcmp.lt.s32.totalorder %v231, 8
      %v234 = vsel %vm232, 1, 0
      %v235 = vsel %vm233, 1, 0
      %vm236 = vcmp.eq.s32.totalorder %v234, 1
      %vm237 = vcmp.eq.s32.totalorder %v235, 1
      %v238 = vsel %vm236, %v188, 0.0
      %v239 = vsel %vm237, %v189, 0.0
      %v240 = vld [vmem:[%s4] sm:$0x1]
      %v241 = vadd.f32 %v238, %v239
      %v242 = vrot.slane %v241, 4
      %v243 = vadd.f32 %v241, %v242
      %v244 = vrot.slane %v243, 2
      %v245 = vadd.f32 %v243, %v244
      %v246 = vrot.slane %v245, 1
      %v247 = vadd.f32 %v245, %v246
      %v248 = vadd.f32 %v240, %v247
      %249 = vst [vmem:[%s4] sm:$0x1] %v248
      %v250 = vld [vmem:[%s5] sm:$0x1]
      %v251 = vmul.f32 %v238, %v238
      %v252 = vmul.f32 %v239, %v239
      %v253 = vadd.f32 %v251, %v252
      %v254 = vrot.slane %v253, 4
      %v255 = vadd.f32 %v253, %v254
      %v256 = vrot.slane %v255, 2
      %v257 = vadd.f32 %v255, %v256
      %v258 = vrot.slane %v257, 1
      %v259 = vadd.f32 %v257, %v258
      %v260 = vadd.f32 %v250, %v259
      %261 = vst [vmem:[%s5] sm:$0x1] %v260
      %v262 = vld [vmem:[%s4] sm:$0x1]
      %v263 = vmul.f32 %v262, 0.125
      %v264 = vld [vmem:[%s5] sm:$0x1]
      %v265 = vmul.f32 %v264, 0.125
      %v266 = vmul.f32 %v263, %v263
      %v267 = vsub.f32 %v265, %v266
      %v268 = vmax.f32 %v267, 0.0
      %269 = vst [vmem:[%s4] sm:$0x1] %v263
      %v270 = vadd.f32 %v268, 1e-05
      %v271 = vrsqrt.pop %v270
      %272 = vst [vmem:[%s5] sm:$0x1] %v271
    $region33: #{mlp_forward.4} parent=1 // pred_fallthru
      _
    // Predicated region
    $region34: #{mlp_forward.4} parent=1 // pred_check
      _
    $region35: #{mlp_forward.4} parent=1 // pred_check_branch
      %274 = sbr.rel (0) target = $region37
    $region36: #{mlp_forward.4} parent=1 // pred_region
      _
    $region37: #{mlp_forward.4} parent=1 // pred_fallthru
      _
    // Predicated region
    $region38: #{mlp_forward.4} parent=1 // pred_check
      _
    $region39: #{mlp_forward.4} parent=1 // pred_check_branch
      %276 = sbr.rel (0) target = $region41
    $region40: #{mlp_forward.4} parent=1 // pred_region
      _
    $region41: #{mlp_forward.4} parent=1 // pred_fallthru
      _
    // Predicated region
    $region42: #{mlp_forward.4} parent=1 // pred_check
      _
    $region43: #{mlp_forward.4} parent=1 // pred_check_branch
      %278 = sbr.rel (0) target = $region45
    $region44: #{mlp_forward.4} parent=1 // pred_region
      _
    $region45: #{mlp_forward.4} parent=1 // pred_fallthru
      _
    // Predicated region
    $region46: #{mlp_forward.4} parent=1 // pred_check
      _
    $region47: #{mlp_forward.4} parent=1 // pred_check_branch
      %280 = sbr.rel (0) target = $region49
    $region48: #{mlp_forward.4} parent=1 // pred_region
      _
    $region49: #{mlp_forward.4} parent=1 // pred_fallthru
      _
    // Predicated region
    $region50: #{mlp_forward.4} parent=1 // pred_check
      _
    $region51: #{mlp_forward.4} parent=1 // pred_check_branch
      %282 = sbr.rel (0) target = $region53
    $region52: #{mlp_forward.4} parent=1 // pred_region
      _
    $region53: #{mlp_forward.4} parent=1 // pred_fallthru
      _
    // Predicated region
    $region54: #{mlp_forward.4} parent=1 // pred_check
      _
    $region55: #{mlp_forward.4} parent=1 // pred_check_branch
      %284 = sbr.rel (0) target = $region57
    $region56: #{mlp_forward.4} parent=1 // pred_region
      _
    $region57: #{mlp_forward.4} parent=1 // pred_fallthru
      _
    %285 = vsyncpa [#allocation3], 1
    %286 = vsyncpa [#allocation5], 1

// kernel: mlp_forward.6
$region0: #{mlp_forward.6}
  #allocation0 [shape = 'u32[]', space=smem, size = 0x4, offset = 0x4, fixed_abs, tag = 'smem constant byte address 0x4 - core index']
  #allocation1 [shape = 'u32[144,128]{1,0:T(1,128)}', space=vmem, size = 0x12000, scoped, tag = 'internal scratch']
  %s0 = inlined_call_operand.vmem [shape: bf16[16,128], index: 0, kind: input, shape index: {}]
  %s1 = inlined_call_operand.vmem [shape: f32[1,128], index: 1, kind: input, shape index: {}]
  %s2 = inlined_call_operand.vmem [shape: f32[1,128], index: 2, kind: input, shape index: {}]
  %s3 = inlined_call_operand.vmem [shape: f32[1,128], index: 3, kind: input, shape index: {}]
  %s4 = inlined_call_operand.vmem [shape: f32[1,128], index: 4, kind: input, shape index: {}]
  %s5 = inlined_call_operand.vmem [shape: bf16[128,128], index: 5, kind: input, shape index: {}]
  %s6 = inlined_call_operand.vmem [shape: f32[1,128], index: 6, kind: input, shape index: {}]
  %s7 = inlined_call_operand.vmem [shape: bf16[16,128], index: 7, kind: output, shape index: {}]
  %s8 = sld [smem:[#allocation0]]
  $region38: #{mlp_forward.6} parent=0
    _
  %s10 = ssub.s32 1, %s8
  %s11 = scalar_select 0, %s10, %s8
  // Predicated region
  $region2: #{mlp_forward.6} parent=0 // pred_check
    _
  $region3: #{mlp_forward.6} parent=0 // pred_check_branch
    %13 = sbr.rel (0) target = $region5
  $region4: #{mlp_forward.6} parent=0 // pred_region
    _
  $region5: #{mlp_forward.6} parent=0 // pred_fallthru
    _
  // Predicated region
  $region6: #{mlp_forward.6} parent=0 // pred_check
    _
  $region7: #{mlp_forward.6} parent=0 // pred_check_branch
    %15 = sbr.rel (0) target = $region9
  $region8: #{mlp_forward.6} parent=0 // pred_region
    _
  $region9: #{mlp_forward.6} parent=0 // pred_fallthru
    _
  // Predicated region
  $region10: #{mlp_forward.6} parent=0 // pred_check
    _
  $region11: #{mlp_forward.6} parent=0 // pred_check_branch
    %17 = sbr.rel (0) target = $region13
  $region12: #{mlp_forward.6} parent=0 // pred_region
    _
  $region13: #{mlp_forward.6} parent=0 // pred_fallthru
    _
  // Predicated region
  $region14: #{mlp_forward.6} parent=0 // pred_check
    _
  $region15: #{mlp_forward.6} parent=0 // pred_check_branch
    %19 = sbr.rel (0) target = $region17
  $region16: #{mlp_forward.6} parent=0 // pred_region
    _
  $region17: #{mlp_forward.6} parent=0 // pred_fallthru
    _
  // Predicated region
  $region18: #{mlp_forward.6} parent=0 // pred_check
    _
  $region19: #{mlp_forward.6} parent=0 // pred_check_branch
    %21 = sbr.rel (0) target = $region21
  $region20: #{mlp_forward.6} parent=0 // pred_region
    _
  $region21: #{mlp_forward.6} parent=0 // pred_fallthru
    _
  // Predicated region
  $region22: #{mlp_forward.6} parent=0 // pred_check
    _
  $region23: #{mlp_forward.6} parent=0 // pred_check_branch
    %23 = sbr.rel (0) target = $region25
  $region24: #{mlp_forward.6} parent=0 // pred_region
    _
  $region25: #{mlp_forward.6} parent=0 // pred_fallthru
    _
  // Predicated region
  $region26: #{mlp_forward.6} parent=0 // pred_check
    _
  $region27: #{mlp_forward.6} parent=0 // pred_check_branch
    %25 = sbr.rel (0) target = $region29
  $region28: #{mlp_forward.6} parent=0 // pred_region
    _
  $region29: #{mlp_forward.6} parent=0 // pred_fallthru
    _
  %v27 = vld [vmem:[%s0] sm:$0xf]
  %v28 = vld [vmem:[%s0 + $0x4] sm:$0xf]
  %v29 = vunpack.c.l.bf16 %v27
  %v30 = vunpack.c.l.bf16 %v28
  %v31 = vld [vmem:[%s1] sm:$0x1]
  %v33 = vlaneseq
  %v34 = vshrl.u32 %v33, 7
  %v35 = vsub.s32 0, %v34
  %v36 = vrot.slane %v31, %v35
  %v38 = vsub.f32 %v29, %v36
  %v39 = vsub.f32 %v30, %v36
  %v40 = vld [vmem:[%s2] sm:$0x1]
  %v41 = vld [vmem:[%s3] sm:$0x1]
  %v42 = vmul.f32 %v40, %v41
  %v44 = vlaneseq
  %v45 = vshrl.u32 %v44, 7
  %v46 = vsub.s32 0, %v45
  %v47 = vrot.slane %v42, %v46
  %v49 = vmul.f32 %v38, %v47
  %v50 = vmul.f32 %v39, %v47
  %v51 = vld [vmem:[%s4] sm:$0x1]
  %v53 = vlaneseq
  %v54 = vshrl.u32 %v53, 7
  %v55 = vsub.s32 0, %v54
  %v56 = vrot.slane %v51, %v55
  %v58 = vadd.f32 %v49, %v56
  %v59 = vadd.f32 %v50, %v56
  %v60 = vpack.c.bf16 %v59, %v58
  %v61 = vld [vmem:[%s5] sm:$0xf]
  %v62 = vld [vmem:[%s5 + $0x4] sm:$0xf]
  %v63 = vld [vmem:[%s5 + $0x8] sm:$0xf]
  %v64 = vld [vmem:[%s5 + $0xc] sm:$0xf]
  %v65 = vld [vmem:[%s5 + $0x10] sm:$0xf]
  %v66 = vld [vmem:[%s5 + $0x14] sm:$0xf]
  %v67 = vld [vmem:[%s5 + $0x18] sm:$0xf]
  %v68 = vld [vmem:[%s5 + $0x1c] sm:$0xf]
  %v69 = vld [vmem:[%s5 + $0x20] sm:$0xf]
  %v70 = vld [vmem:[%s5 + $0x24] sm:$0xf]
  %v71 = vld [vmem:[%s5 + $0x28] sm:$0xf]
  %v72 = vld [vmem:[%s5 + $0x2c] sm:$0xf]
  %v73 = vld [vmem:[%s5 + $0x30] sm:$0xf]
  %v74 = vld [vmem:[%s5 + $0x34] sm:$0xf]
  %v75 = vld [vmem:[%s5 + $0x38] sm:$0xf]
  %v76 = vld [vmem:[%s5 + $0x3c] sm:$0xf]
  %v77 = vld [vmem:[%s6] sm:$0x1]
  %v79 = vlaneseq
  %v80 = vshrl.u32 %v79, 7
  %v81 = vsub.s32 0, %v80
  %v82 = vrot.slane %v77, %v81
  %v100 = vunpack.c.l.b16 %v61
  %v101 = vunpack.c.l.b16 %v62
  %v102 = vunpack.c.l.b16 %v63
  %v103 = vunpack.c.l.b16 %v64
  %v104 = vunpack.c.l.b16 %v65
  %v105 = vunpack.c.l.b16 %v66
  %v106 = vunpack.c.l.b16 %v67
  %v107 = vunpack.c.l.b16 %v68
  %v108 = vunpack.c.l.b16 %v69
  %v109 = vunpack.c.l.b16 %v70
  %v110 = vunpack.c.l.b16 %v71
  %v111 = vunpack.c.l.b16 %v72
  %v112 = vunpack.c.l.b16 %v73
  %v113 = vunpack.c.l.b16 %v74
  %v114 = vunpack.c.l.b16 %v75
  %v115 = vunpack.c.l.b16 %v76
  %v116 = vpack.c.b16 %v101, %v100
  %v117 = vpack.c.b16 %v103, %v102
  %v118 = vpack.c.b16 %v105, %v104
  %v119 = vpack.c.b16 %v107, %v106
  %v120 = vpack.c.b16 %v109, %v108
  %v121 = vpack.c.b16 %v111, %v110
  %v122 = vpack.c.b16 %v113, %v112
  %v123 = vpack.c.b16 %v115, %v114
  %132 = vmatprep.subr.bf16.mxu0 0
  %133 = vmatpush1.bf16.msra.mxu0 %v116
  %134 = vmatprep.subr.bf16.mxu0 0
  %135 = vmatpush1.bf16.msra.mxu0 %v117
  %136 = vmatprep.subr.bf16.mxu0 0
  %137 = vmatpush1.bf16.msra.mxu0 %v118
  %138 = vmatprep.subr.bf16.mxu0 0
  %139 = vmatpush1.bf16.msra.mxu0 %v119
  %140 = vmatprep.subr.bf16.mxu0 0
  %141 = vmatpush1.bf16.msra.mxu0 %v120
  %142 = vmatprep.subr.bf16.mxu0 0
  %143 = vmatpush1.bf16.msra.mxu0 %v121
  %144 = vmatprep.subr.bf16.mxu0 0
  %145 = vmatpush1.bf16.msra.mxu0 %v122
  %146 = vmatprep.subr.bf16.mxu0 0
  %147 = vmatpush1.bf16.msra.mxu0 %v123
  %148 = vmatprep.subr.bf16.mxu0 0
  %149 = vmatpush1.bf16.msra.mxu0 0
  %150 = vmatprep.subr.bf16.mxu0 0
  %151 = vmatpush1.bf16.msra.mxu0 0
  %152 = vmatprep.subr.bf16.mxu0 0
  %153 = vmatpush1.bf16.msra.mxu0 0
  %154 = vmatprep.subr.bf16.mxu0 0
  %155 = vmatpush1.bf16.msra.mxu0 0
  %156 = vmatprep.subr.bf16.mxu0 0
  %157 = vmatpush1.bf16.msra.mxu0 0
  %158 = vmatprep.subr.bf16.mxu0 0
  %159 = vmatpush1.bf16.msra.mxu0 0
  %160 = vmatprep.subr.bf16.mxu0 0
  %161 = vmatpush1.bf16.msra.mxu0 0
  %162 = vmatprep.subr.bf16.mxu0 0
  %163 = vmatpush1.bf16.msra.mxu0 0
  %164 = vmatprep.mubr.bf16.mxu0 0
  %165 = vmatmul.mubr.bf16.gmra.mrb[0].mxu0 %v60
  %v166 = vpop.f32.mrb[0].mxu0
  %v167 = vadd.f32 %v82, %v166
  %v168 = vpop.f32.mrb[0].mxu0
  %v169 = vpop.f32.mrb[0].mxu0
  %v170 = vadd.f32 %v82, %v169
  %v171 = vpop.f32.mrb[0].mxu0
  %172 = vdwg.mxu0
  %v173 = vxor.u32 %v167, 2147483648
  %v174 = vxor.u32 %v170, 2147483648
  %v175 = vmul.f32 %v173, 1.442695
  %v176 = vpow.pop %v175
  %v177 = vmul.f32 %v174, 1.442695
  %v178 = vpow.pop %v177
  %v179 = vadd.f32 %v176, 1.0
  %v180 = vadd.f32 %v178, 1.0
  %v181 = vrcp.pop %v179
  %v182 = vmul.f32 1.0, %v181
  %v183 = vrcp.pop %v180
  %v184 = vmul.f32 1.0, %v183
  %v185 = vmul.f32 %v167, %v182
  %v186 = vmul.f32 %v170, %v184
  %v187 = vpack.c.bf16 %v186, %v185
  %v189 = vunpack.c.l.b16 %v187
  %v190 = vunpack.c.h.b16 %v187
  %v191 = vpack.c.b16 %v189, %v189
  %v192 = vpack.c.b16 %v190, %v190
  %195 = vst [vmem:[%s7] sm:$0xf] %v191
  %196 = vst [vmem:[%s7 + $0x4] sm:$0xf] %v192
  // Predicated region
  $region30: #{mlp_forward.6} parent=0 // pred_check
    _
  $region31: #{mlp_forward.6} parent=0 // pred_check_branch
    %198 = sbr.rel (0) target = $region33
  $region32: #{mlp_forward.6} parent=0 // pred_region
    _
  $region33: #{mlp_forward.6} parent=0 // pred_fallthru
    _
  // Predicated region
  $region34: #{mlp_forward.6} parent=0 // pred_check
    _
  $region35: #{mlp_forward.6} parent=0 // pred_check_branch
    %200 = sbr.rel (0) target = $region37
  $region36: #{mlp_forward.6} parent=0 // pred_region
    _
  $region37: #{mlp_forward.6} parent=0 // pred_fallthru
    _

// kernel: mlp_forward.7
$region0: #{mlp_forward.7}
  #allocation0 [shape = 'u32[]', space=smem, size = 0x4, offset = 0x4, fixed_abs, tag = 'smem constant byte address 0x4 - core index']
  #allocation1 [shape = 'u32[144,128]{1,0:T(1,128)}', space=vmem, size = 0x12000, scoped, tag = 'internal scratch']
  %s0 = inlined_call_operand.vmem [shape: bf16[16,128], index: 0, kind: input, shape index: {}]
  %s1 = inlined_call_operand.vmem [shape: bf16[128,128], index: 1, kind: input, shape index: {}]
  %s2 = inlined_call_operand.vmem [shape: f32[1,128], index: 2, kind: input, shape index: {}]
  %s3 = inlined_call_operand.vmem [shape: f32[16,128], index: 3, kind: output, shape index: {}]
  %s4 = sld [smem:[#allocation0]]
  $region22: #{mlp_forward.7} parent=0
    _
  %s6 = ssub.s32 1, %s4
  %s7 = scalar_select 0, %s6, %s4
  // Predicated region
  $region2: #{mlp_forward.7} parent=0 // pred_check
    _
  $region3: #{mlp_forward.7} parent=0 // pred_check_branch
    %9 = sbr.rel (0) target = $region5
  $region4: #{mlp_forward.7} parent=0 // pred_region
    _
  $region5: #{mlp_forward.7} parent=0 // pred_fallthru
    _
  // Predicated region
  $region6: #{mlp_forward.7} parent=0 // pred_check
    _
  $region7: #{mlp_forward.7} parent=0 // pred_check_branch
    %11 = sbr.rel (0) target = $region9
  $region8: #{mlp_forward.7} parent=0 // pred_region
    _
  $region9: #{mlp_forward.7} parent=0 // pred_fallthru
    _
  // Predicated region
  $region10: #{mlp_forward.7} parent=0 // pred_check
    _
  $region11: #{mlp_forward.7} parent=0 // pred_check_branch
    %13 = sbr.rel (0) target = $region13
  $region12: #{mlp_forward.7} parent=0 // pred_region
    _
  $region13: #{mlp_forward.7} parent=0 // pred_fallthru
    _
  %v15 = vld [vmem:[%s0] sm:$0xf]
  %v16 = vld [vmem:[%s0 + $0x4] sm:$0xf]
  %v17 = vld [vmem:[%s1] sm:$0xf]
  %v18 = vld [vmem:[%s1 + $0x4] sm:$0xf]
  %v19 = vld [vmem:[%s1 + $0x8] sm:$0xf]
  %v20 = vld [vmem:[%s1 + $0xc] sm:$0xf]
  %v21 = vld [vmem:[%s1 + $0x10] sm:$0xf]
  %v22 = vld [vmem:[%s1 + $0x14] sm:$0xf]
  %v23 = vld [vmem:[%s1 + $0x18] sm:$0xf]
  %v24 = vld [vmem:[%s1 + $0x1c] sm:$0xf]
  %v25 = vld [vmem:[%s1 + $0x20] sm:$0xf]
  %v26 = vld [vmem:[%s1 + $0x24] sm:$0xf]
  %v27 = vld [vmem:[%s1 + $0x28] sm:$0xf]
  %v28 = vld [vmem:[%s1 + $0x2c] sm:$0xf]
  %v29 = vld [vmem:[%s1 + $0x30] sm:$0xf]
  %v30 = vld [vmem:[%s1 + $0x34] sm:$0xf]
  %v31 = vld [vmem:[%s1 + $0x38] sm:$0xf]
  %v32 = vld [vmem:[%s1 + $0x3c] sm:$0xf]
  %v33 = vld [vmem:[%s2] sm:$0x1]
  %v35 = vlaneseq
  %v36 = vshrl.u32 %v35, 7
  %v37 = vsub.s32 0, %v36
  %v38 = vrot.slane %v33, %v37
  %v42 = vunpack.c.l.b16 %v15
  %v43 = vunpack.c.l.b16 %v16
  %v44 = vpack.c.b16 %v43, %v42
  %v62 = vunpack.c.l.b16 %v17
  %v63 = vunpack.c.l.b16 %v18
  %v64 = vunpack.c.l.b16 %v19
  %v65 = vunpack.c.l.b16 %v20
  %v66 = vunpack.c.l.b16 %v21
  %v67 = vunpack.c.l.b16 %v22
  %v68 = vunpack.c.l.b16 %v23
  %v69 = vunpack.c.l.b16 %v24
  %v70 = vunpack.c.l.b16 %v25
  %v71 = vunpack.c.l.b16 %v26
  %v72 = vunpack.c.l.b16 %v27
  %v73 = vunpack.c.l.b16 %v28
  %v74 = vunpack.c.l.b16 %v29
  %v75 = vunpack.c.l.b16 %v30
  %v76 = vunpack.c.l.b16 %v31
  %v77 = vunpack.c.l.b16 %v32
  %v78 = vpack.c.b16 %v63, %v62
  %v79 = vpack.c.b16 %v65, %v64
  %v80 = vpack.c.b16 %v67, %v66
  %v81 = vpack.c.b16 %v69, %v68
  %v82 = vpack.c.b16 %v71, %v70
  %v83 = vpack.c.b16 %v73, %v72
  %v84 = vpack.c.b16 %v75, %v74
  %v85 = vpack.c.b16 %v77, %v76
  %94 = vmatprep.subr.bf16.mxu0 0
  %95 = vmatpush1.bf16.msra.mxu0 %v78
  %96 = vmatprep.subr.bf16.mxu0 0
  %97 = vmatpush1.bf16.msra.mxu0 %v79
  %98 = vmatprep.subr.bf16.mxu0 0
  %99 = vmatpush1.bf16.msra.mxu0 %v80
  %100 = vmatprep.subr.bf16.mxu0 0
  %101 = vmatpush1.bf16.msra.mxu0 %v81
  %102 = vmatprep.subr.bf16.mxu0 0
  %103 = vmatpush1.bf16.msra.mxu0 %v82
  %104 = vmatprep.subr.bf16.mxu0 0
  %105 = vmatpush1.bf16.msra.mxu0 %v83
  %106 = vmatprep.subr.bf16.mxu0 0
  %107 = vmatpush1.bf16.msra.mxu0 %v84
  %108 = vmatprep.subr.bf16.mxu0 0
  %109 = vmatpush1.bf16.msra.mxu0 %v85
  %110 = vmatprep.subr.bf16.mxu0 0
  %111 = vmatpush1.bf16.msra.mxu0 0
  %112 = vmatprep.subr.bf16.mxu0 0
  %113 = vmatpush1.bf16.msra.mxu0 0
  %114 = vmatprep.subr.bf16.mxu0 0
  %115 = vmatpush1.bf16.msra.mxu0 0
  %116 = vmatprep.subr.bf16.mxu0 0
  %117 = vmatpush1.bf16.msra.mxu0 0
  %118 = vmatprep.subr.bf16.mxu0 0
  %119 = vmatpush1.bf16.msra.mxu0 0
  %120 = vmatprep.subr.bf16.mxu0 0
  %121 = vmatpush1.bf16.msra.mxu0 0
  %122 = vmatprep.subr.bf16.mxu0 0
  %123 = vmatpush1.bf16.msra.mxu0 0
  %124 = vmatprep.subr.bf16.mxu0 0
  %125 = vmatpush1.bf16.msra.mxu0 0
  %126 = vmatprep.mubr.bf16.mxu0 0
  %127 = vmatmul.mubr.bf16.gmra.mrb[0].mxu0 %v44
  %v128 = vpop.f32.mrb[0].mxu0
  %v129 = vadd.f32 %v38, %v128
  %v130 = vpop.f32.mrb[0].mxu0
  %v131 = vpop.f32.mrb[0].mxu0
  %v132 = vadd.f32 %v38, %v131
  %v133 = vpop.f32.mrb[0].mxu0
  %134 = vdwg.mxu0
  %135 = vst [vmem:[%s3] sm:$0xff] %v129
  %136 = vst [vmem:[%s3 + $0x8] sm:$0xff] %v132
  // Predicated region
  $region14: #{mlp_forward.7} parent=0 // pred_check
    _
  $region15: #{mlp_forward.7} parent=0 // pred_check_branch
    %138 = sbr.rel (0) target = $region17
  $region16: #{mlp_forward.7} parent=0 // pred_region
    _
  $region17: #{mlp_forward.7} parent=0 // pred_fallthru
    _
  // Predicated region
  $region18: #{mlp_forward.7} parent=0 // pred_check
    _
  $region19: #{mlp_forward.7} parent=0 // pred_check_branch
    %140 = sbr.rel (0) target = $region21
  $region20: #{mlp_forward.7} parent=0 // pred_region
    _
  $region21: #{mlp_forward.7} parent=0 // pred_fallthru
    _

</llo_original>
